<compile_context>
chip_gen: v5e
topology: v5e:2x2
jax: 0.10.0
libtpu: 0.0.40
codegen_flags: <defaults>
</compile_context>

<pallas_src>
import jax
import jax.numpy as jnp
from jax import lax
from jax.experimental import pallas as pl
from jax.experimental.pallas import tpu as pltpu

CDTNL_LANG_SIZE = 16  # vocabulary size for the conditional language tokens
LN_EPS = 1e-5


def _layernorm(v, w, b):
    mu = jnp.mean(v, axis=-1, keepdims=True)
    var = jnp.mean((v - mu) * (v - mu), axis=-1, keepdims=True)
    return (v - mu) * lax.rsqrt(var + LN_EPS) * w + b


def _cond_lstm_kernel(tok_ref, emb_ref, wih_ref, whh_ref, bias_ref,
                      lnh_w_ref, lnh_b_ref, lnc_w_ref, lnc_b_ref,
                      out_ref, gx_ref):
    """Whole-sequence LSTMCell recurrence in one kernel invocation."""
    B, H = out_ref.shape
    SB = tok_ref.shape[0]          # S * B
    V = emb_ref.shape[0]
    S = SB // B

    # ---- Hoisted, non-recurrent work (single pass over the full sequence) ----
    # Embedding gather as a one-hot matmul (vocab is tiny and VMEM-resident),
    # then the input projection for all steps at once: gates_x = E @ W_ih^T + b.
    tok = tok_ref[...]                                               # (S*B, 1) i32
    onehot = (tok == lax.broadcasted_iota(jnp.int32, (SB, V), 1)
              ).astype(jnp.float32)                                  # (S*B, V)
    emb_all = jnp.dot(onehot, emb_ref[...],
                      preferred_element_type=jnp.float32)            # (S*B, H)
    gx_ref[...] = (jnp.dot(emb_all, wih_ref[...],
                           preferred_element_type=jnp.float32)
                   + bias_ref[...])                                  # (S*B, 4H)

    # Hoist all parameter reads out of the serial loop.
    whh = whh_ref[...]                                               # (H, 4H)
    lnh_w = lnh_w_ref[...]
    lnh_b = lnh_b_ref[...]
    lnc_w = lnc_w_ref[...]
    lnc_b = lnc_b_ref[...]

    def step(s, carry):
        h, c = carry
        row = pl.multiple_of(s * B, B)
        # Only the recurrent projection sits on the serial dependence chain.
        gates = gx_ref[pl.ds(row, B), :] + jnp.dot(
            h, whh, preferred_element_type=jnp.float32)              # (B, 4H)
        sig = jax.nn.sigmoid(gates)       # one EUP issue covers i, f, o gates
        i_g = sig[:, 0 * H:1 * H]
        f_g = sig[:, 1 * H:2 * H]
        o_g = sig[:, 3 * H:4 * H]
        g_g = jnp.tanh(gates[:, 2 * H:3 * H])
        c_new = f_g * c + i_g * g_g
        h_new = o_g * jnp.tanh(c_new)
        h_new = _layernorm(h_new, lnh_w, lnh_b)
        c_new = _layernorm(c_new, lnc_w, lnc_b)
        return h_new, c_new

    h0 = jnp.zeros((B, H), jnp.float32)
    c0 = jnp.zeros((B, H), jnp.float32)
    h_final, _ = lax.fori_loop(0, S, step, (h0, c0), unroll=True)

    out_ref[...] = h_final.astype(out_ref.dtype)


def conditional_lstm_forward(x_tokens, params):
    """
    x_tokens: int32 (B, S) token indices
    params: dict with 'emb' (V,H), 'w_ih' (4H,H), 'w_hh' (4H,H),
            'b_ih' (4H,), 'b_hh' (4H,), 'lnh_w','lnh_b','lnc_w','lnc_b' (H,)
    returns: float32 (B, H)
    """
    B, S = x_tokens.shape
    V, H = params["emb"].shape

    # Token ids ordered (step-major, batch-minor) so gates_x rows [s*B:(s+1)*B]
    # belong to step s.
    tok = jnp.transpose(x_tokens).reshape(S * B, 1).astype(jnp.int32)

    w_ih_t = params["w_ih"].T                                   # (H, 4H)
    w_hh_t = params["w_hh"].T                                   # (H, 4H)
    bias = (params["b_ih"] + params["b_hh"]).reshape(1, 4 * H)  # (1, 4H)
    lnh_w = params["lnh_w"].reshape(1, H)
    lnh_b = params["lnh_b"].reshape(1, H)
    lnc_w = params["lnc_w"].reshape(1, H)
    lnc_b = params["lnc_b"].reshape(1, H)

    vmem = pl.BlockSpec(memory_space=pltpu.MemorySpace.VMEM)

    return pl.pallas_call(
        _cond_lstm_kernel,
        out_shape=jax.ShapeDtypeStruct((B, H), jnp.float32),
        in_specs=[vmem] * 9,
        out_specs=vmem,
        scratch_shapes=[
            pltpu.VMEM((S * B, 4 * H), jnp.float32),  # hoisted input-projection gates
        ],
    )(tok, params["emb"], w_ih_t, w_hh_t, bias, lnh_w, lnh_b, lnc_w, lnc_b)


def _reference_forward(x_tokens, params):
    """Pure-JAX reference of the PyTorch forward for verification."""
    B, S = x_tokens.shape
    H = params["emb"].shape[1]
    h = jnp.zeros((B, H), jnp.float32)
    c = jnp.zeros((B, H), jnp.float32)
    for s in range(S):
        e = params["emb"][x_tokens[:, s]]
        gates = (e @ params["w_ih"].T + params["b_ih"]
                 + h @ params["w_hh"].T + params["b_hh"])
        i = jax.nn.sigmoid(gates[:, 0 * H:1 * H])
        f = jax.nn.sigmoid(gates[:, 1 * H:2 * H])
        g = jnp.tanh(gates[:, 2 * H:3 * H])
        o = jax.nn.sigmoid(gates[:, 3 * H:4 * H])
        c = f * c + i * g
        h = o * jnp.tanh(c)
        h = _layernorm(h, params["lnh_w"], params["lnh_b"])
        c = _layernorm(c, params["lnc_w"], params["lnc_b"])
    return h


def init_params(key, h_size):
    """Deterministic parameter init mirroring the module's __init__ shapes."""
    ks = jax.random.split(key, 5)
    H = h_size
    k = 1.0 / jnp.sqrt(H)
    return {
        "emb":  jax.random.normal(ks[0], (CDTNL_LANG_SIZE, H), jnp.float32),
        "w_ih": jax.random.uniform(ks[1], (4 * H, H), jnp.float32, -k, k),
        "w_hh": jax.random.uniform(ks[2], (4 * H, H), jnp.float32, -k, k),
        "b_ih": jax.random.uniform(ks[3], (4 * H,), jnp.float32, -k, k),
        "b_hh": jax.random.uniform(ks[4], (4 * H,), jnp.float32, -k, k),
        "lnh_w": jnp.ones((H,), jnp.float32),
        "lnh_b": jnp.zeros((H,), jnp.float32),
        "lnc_w": jnp.ones((H,), jnp.float32),
        "lnc_b": jnp.zeros((H,), jnp.float32),
    }


if __name__ == "__main__":
    B, S, H = 2, 8, 32
    key = jax.random.PRNGKey(0)
    k_tok, k_par = jax.random.split(key)

    x = jax.random.randint(k_tok, (B, S), 0, CDTNL_LANG_SIZE, dtype=jnp.int32)
    params = init_params(k_par, H)

    fwd = jax.jit(conditional_lstm_forward)
    out = fwd(x, params)
    out = jax.block_until_ready(out)

    ref = _reference_forward(x, params)
    assert out.shape == (B, H)
    assert jnp.allclose(out, ref, atol=2e-4, rtol=2e-4), (
        f"max abs diff {jnp.max(jnp.abs(out - ref))}")

    print("KERNEL_OK")
</pallas_src>

<mosaic_0001>
module attributes {stable_mosaic.version = 11 : i64} {
  func.func @_cond_lstm_kernel(%arg0: memref<16x1xi32, #tpu.memory_space<vmem>>, %arg1: memref<16x32xf32, #tpu.memory_space<vmem>>, %arg2: memref<32x128xf32, #tpu.memory_space<vmem>>, %arg3: memref<32x128xf32, #tpu.memory_space<vmem>>, %arg4: memref<1x128xf32, #tpu.memory_space<vmem>>, %arg5: memref<1x32xf32, #tpu.memory_space<vmem>>, %arg6: memref<1x32xf32, #tpu.memory_space<vmem>>, %arg7: memref<1x32xf32, #tpu.memory_space<vmem>>, %arg8: memref<1x32xf32, #tpu.memory_space<vmem>>, %arg9: memref<2x32xf32, #tpu.memory_space<vmem>>, %arg10: memref<16x128xf32, #tpu.memory_space<vmem>>) attributes {dimension_semantics = [], scalar_prefetch = 0 : i64, scratch_operands = 1 : i64, tpu.core_type = #tpu.core_type<tc>} {
    %c0 = arith.constant 0 : index
    %c0_0 = arith.constant 0 : index
    %0 = vector.load %arg0[%c0, %c0_0] : memref<16x1xi32, #tpu.memory_space<vmem>>, vector<16x1xi32>
    %1 = tpu.iota {dimensions = array<i32: 1>} : vector<16x16xi32>
    %2 = vector.broadcast %0 : vector<16x1xi32> to vector<16x16xi32>
    %3 = arith.cmpi eq, %2, %1 : vector<16x16xi32>
    %4 = arith.extui %3 : vector<16x16xi1> to vector<16x16xi32>
    %5 = arith.sitofp %4 : vector<16x16xi32> to vector<16x16xf32>
    %c0_1 = arith.constant 0 : index
    %c0_2 = arith.constant 0 : index
    %6 = vector.load %arg1[%c0_1, %c0_2] : memref<16x32xf32, #tpu.memory_space<vmem>>, vector<16x32xf32>
    %cst = arith.constant dense<0.000000e+00> : vector<16x32xf32>
    %7 = tpu.matmul %5, %6, %cst {dimension_numbers = #tpu.dot_dimension_numbers<[1], [0], [0], [1], [0, 0, 1, 1], [], []>} : vector<16x16xf32>, vector<16x32xf32>, vector<16x32xf32> -> vector<16x32xf32>
    %c0_3 = arith.constant 0 : index
    %c0_4 = arith.constant 0 : index
    %8 = vector.load %arg2[%c0_3, %c0_4] : memref<32x128xf32, #tpu.memory_space<vmem>>, vector<32x128xf32>
    %cst_5 = arith.constant dense<0.000000e+00> : vector<16x128xf32>
    %9 = tpu.matmul %7, %8, %cst_5 {dimension_numbers = #tpu.dot_dimension_numbers<[1], [0], [0], [1], [0, 0, 1, 1], [], []>} : vector<16x32xf32>, vector<32x128xf32>, vector<16x128xf32> -> vector<16x128xf32>
    %c0_6 = arith.constant 0 : index
    %c0_7 = arith.constant 0 : index
    %10 = vector.load %arg4[%c0_6, %c0_7] : memref<1x128xf32, #tpu.memory_space<vmem>>, vector<1x128xf32>
    %11 = vector.broadcast %10 : vector<1x128xf32> to vector<16x128xf32>
    %12 = arith.addf %9, %11 : vector<16x128xf32>
    %c0_8 = arith.constant 0 : index
    %c0_9 = arith.constant 0 : index
    %13 = vector.load %arg10[%c0_8, %c0_9] : memref<16x128xf32, #tpu.memory_space<vmem>>, vector<16x128xf32>
    tpu.vector_store %arg10[%c0_8, %c0_9], %12 {strides = array<i32>} : memref<16x128xf32, #tpu.memory_space<vmem>>, vector<16x128xf32>,
    %c0_10 = arith.constant 0 : index
    %c0_11 = arith.constant 0 : index
    %14 = vector.load %arg3[%c0_10, %c0_11] : memref<32x128xf32, #tpu.memory_space<vmem>>, vector<32x128xf32>
    %c0_12 = arith.constant 0 : index
    %c0_13 = arith.constant 0 : index
    %15 = vector.load %arg5[%c0_12, %c0_13] : memref<1x32xf32, #tpu.memory_space<vmem>>, vector<1x32xf32>
    %c0_14 = arith.constant 0 : index
    %c0_15 = arith.constant 0 : index
    %16 = vector.load %arg6[%c0_14, %c0_15] : memref<1x32xf32, #tpu.memory_space<vmem>>, vector<1x32xf32>
    %c0_16 = arith.constant 0 : index
    %c0_17 = arith.constant 0 : index
    %17 = vector.load %arg7[%c0_16, %c0_17] : memref<1x32xf32, #tpu.memory_space<vmem>>, vector<1x32xf32>
    %c0_18 = arith.constant 0 : index
    %c0_19 = arith.constant 0 : index
    %18 = vector.load %arg8[%c0_18, %c0_19] : memref<1x32xf32, #tpu.memory_space<vmem>>, vector<1x32xf32>
    %cst_20 = arith.constant 0.000000e+00 : f32
    %19 = vector.broadcast %cst_20 : f32 to vector<2x32xf32>
    %cst_21 = arith.constant 0.000000e+00 : f32
    %20 = vector.broadcast %cst_21 : f32 to vector<2x32xf32>
    %c0_i32 = arith.constant 0 : i32
    %c2_i32 = arith.constant 2 : i32
    %21 = arith.muli %c0_i32, %c2_i32 : i32
    %22 = tpu.assume_multiple %21, 2 : i32
    %23 = arith.index_cast %22 : i32 to index
    %c0_22 = arith.constant 0 : index
    %24 = vector.load %arg10[%23, %c0_22] : memref<16x128xf32, #tpu.memory_space<vmem>>, vector<2x128xf32>
    %cst_23 = arith.constant dense<0.000000e+00> : vector<2x128xf32>
    %25 = tpu.matmul %19, %14, %cst_23 {dimension_numbers = #tpu.dot_dimension_numbers<[1], [0], [0], [1], [0, 0, 1, 1], [], []>} : vector<2x32xf32>, vector<32x128xf32>, vector<2x128xf32> -> vector<2x128xf32>
    %26 = arith.addf %24, %25 : vector<2x128xf32>
    %27 = arith.negf %26 : vector<2x128xf32>
    %28 = math.exp %27 : vector<2x128xf32>
    %cst_24 = arith.constant 1.000000e+00 : f32
    %29 = vector.broadcast %cst_24 : f32 to vector<2x128xf32>
    %30 = arith.addf %29, %28 : vector<2x128xf32>
    %31 = arith.divf %29, %30 : vector<2x128xf32>
    %32 = vector.extract_strided_slice %31 {offsets = [0, 0], sizes = [2, 32], strides = [1, 1]} : vector<2x128xf32> to vector<2x32xf32>
    %33 = vector.extract_strided_slice %31 {offsets = [0, 32], sizes = [2, 32], strides = [1, 1]} : vector<2x128xf32> to vector<2x32xf32>
    %34 = vector.extract_strided_slice %31 {offsets = [0, 96], sizes = [2, 32], strides = [1, 1]} : vector<2x128xf32> to vector<2x32xf32>
    %35 = vector.extract_strided_slice %26 {offsets = [0, 64], sizes = [2, 32], strides = [1, 1]} : vector<2x128xf32> to vector<2x32xf32>
    %36 = math.tanh %35 : vector<2x32xf32>
    %37 = arith.mulf %33, %20 : vector<2x32xf32>
    %38 = arith.mulf %32, %36 : vector<2x32xf32>
    %39 = arith.addf %37, %38 : vector<2x32xf32>
    %40 = math.tanh %39 : vector<2x32xf32>
    %41 = arith.mulf %34, %40 : vector<2x32xf32>
    %cst_25 = arith.constant dense<0.000000e+00> : vector<2xf32>
    %42 = vector.multi_reduction <add>, %41, %cst_25 [1] : vector<2x32xf32> to vector<2xf32>
    %43 = vector.shape_cast %42 : vector<2xf32> to vector<2x1xf32>
    %cst_26 = arith.constant 3.200000e+01 : f32
    %44 = vector.broadcast %cst_26 : f32 to vector<2x1xf32>
    %45 = arith.divf %43, %44 : vector<2x1xf32>
    %46 = vector.broadcast %45 : vector<2x1xf32> to vector<2x32xf32>
    %47 = arith.subf %41, %46 : vector<2x32xf32>
    %48 = vector.broadcast %45 : vector<2x1xf32> to vector<2x32xf32>
    %49 = arith.subf %41, %48 : vector<2x32xf32>
    %50 = arith.mulf %47, %49 : vector<2x32xf32>
    %cst_27 = arith.constant dense<0.000000e+00> : vector<2xf32>
    %51 = vector.multi_reduction <add>, %50, %cst_27 [1] : vector<2x32xf32> to vector<2xf32>
    %52 = vector.shape_cast %51 : vector<2xf32> to vector<2x1xf32>
    %cst_28 = arith.constant 3.200000e+01 : f32
    %53 = vector.broadcast %cst_28 : f32 to vector<2x1xf32>
    %54 = arith.divf %52, %53 : vector<2x1xf32>
    %55 = vector.broadcast %45 : vector<2x1xf32> to vector<2x32xf32>
    %56 = arith.subf %41, %55 : vector<2x32xf32>
    %cst_29 = arith.constant 9.99999974E-6 : f32
    %57 = vector.broadcast %cst_29 : f32 to vector<2x1xf32>
    %58 = arith.addf %54, %57 : vector<2x1xf32>
    %59 = math.rsqrt %58 : vector<2x1xf32>
    %60 = vector.broadcast %59 : vector<2x1xf32> to vector<2x32xf32>
    %61 = arith.mulf %56, %60 : vector<2x32xf32>
    %62 = vector.broadcast %15 : vector<1x32xf32> to vector<2x32xf32>
    %63 = arith.mulf %61, %62 : vector<2x32xf32>
    %64 = vector.broadcast %16 : vector<1x32xf32> to vector<2x32xf32>
    %65 = arith.addf %63, %64 : vector<2x32xf32>
    %cst_30 = arith.constant dense<0.000000e+00> : vector<2xf32>
    %66 = vector.multi_reduction <add>, %39, %cst_30 [1] : vector<2x32xf32> to vector<2xf32>
    %67 = vector.shape_cast %66 : vector<2xf32> to vector<2x1xf32>
    %cst_31 = arith.constant 3.200000e+01 : f32
    %68 = vector.broadcast %cst_31 : f32 to vector<2x1xf32>
    %69 = arith.divf %67, %68 : vector<2x1xf32>
    %70 = vector.broadcast %69 : vector<2x1xf32> to vector<2x32xf32>
    %71 = arith.subf %39, %70 : vector<2x32xf32>
    %72 = vector.broadcast %69 : vector<2x1xf32> to vector<2x32xf32>
    %73 = arith.subf %39, %72 : vector<2x32xf32>
    %74 = arith.mulf %71, %73 : vector<2x32xf32>
    %cst_32 = arith.constant dense<0.000000e+00> : vector<2xf32>
    %75 = vector.multi_reduction <add>, %74, %cst_32 [1] : vector<2x32xf32> to vector<2xf32>
    %76 = vector.shape_cast %75 : vector<2xf32> to vector<2x1xf32>
    %cst_33 = arith.constant 3.200000e+01 : f32
    %77 = vector.broadcast %cst_33 : f32 to vector<2x1xf32>
    %78 = arith.divf %76, %77 : vector<2x1xf32>
    %79 = vector.broadcast %69 : vector<2x1xf32> to vector<2x32xf32>
    %80 = arith.subf %39, %79 : vector<2x32xf32>
    %cst_34 = arith.constant 9.99999974E-6 : f32
    %81 = vector.broadcast %cst_34 : f32 to vector<2x1xf32>
    %82 = arith.addf %78, %81 : vector<2x1xf32>
    %83 = math.rsqrt %82 : vector<2x1xf32>
    %84 = vector.broadcast %83 : vector<2x1xf32> to vector<2x32xf32>
    %85 = arith.mulf %80, %84 : vector<2x32xf32>
    %86 = vector.broadcast %17 : vector<1x32xf32> to vector<2x32xf32>
    %87 = arith.mulf %85, %86 : vector<2x32xf32>
    %88 = vector.broadcast %18 : vector<1x32xf32> to vector<2x32xf32>
    %89 = arith.addf %87, %88 : vector<2x32xf32>
    %c1_i32 = arith.constant 1 : i32
    %c2_i32_35 = arith.constant 2 : i32
    %90 = arith.muli %c1_i32, %c2_i32_35 : i32
    %91 = tpu.assume_multiple %90, 2 : i32
    %92 = arith.index_cast %91 : i32 to index
    %c0_36 = arith.constant 0 : index
    %93 = vector.load %arg10[%92, %c0_36] : memref<16x128xf32, #tpu.memory_space<vmem>>, vector<2x128xf32>
    %cst_37 = arith.constant dense<0.000000e+00> : vector<2x128xf32>
    %94 = tpu.matmul %65, %14, %cst_37 {dimension_numbers = #tpu.dot_dimension_numbers<[1], [0], [0], [1], [0, 0, 1, 1], [], []>} : vector<2x32xf32>, vector<32x128xf32>, vector<2x128xf32> -> vector<2x128xf32>
    %95 = arith.addf %93, %94 : vector<2x128xf32>
    %96 = arith.negf %95 : vector<2x128xf32>
    %97 = math.exp %96 : vector<2x128xf32>
    %cst_38 = arith.constant 1.000000e+00 : f32
    %98 = vector.broadcast %cst_38 : f32 to vector<2x128xf32>
    %99 = arith.addf %98, %97 : vector<2x128xf32>
    %100 = arith.divf %98, %99 : vector<2x128xf32>
    %101 = vector.extract_strided_slice %100 {offsets = [0, 0], sizes = [2, 32], strides = [1, 1]} : vector<2x128xf32> to vector<2x32xf32>
    %102 = vector.extract_strided_slice %100 {offsets = [0, 32], sizes = [2, 32], strides = [1, 1]} : vector<2x128xf32> to vector<2x32xf32>
    %103 = vector.extract_strided_slice %100 {offsets = [0, 96], sizes = [2, 32], strides = [1, 1]} : vector<2x128xf32> to vector<2x32xf32>
    %104 = vector.extract_strided_slice %95 {offsets = [0, 64], sizes = [2, 32], strides = [1, 1]} : vector<2x128xf32> to vector<2x32xf32>
    %105 = math.tanh %104 : vector<2x32xf32>
    %106 = arith.mulf %102, %89 : vector<2x32xf32>
    %107 = arith.mulf %101, %105 : vector<2x32xf32>
    %108 = arith.addf %106, %107 : vector<2x32xf32>
    %109 = math.tanh %108 : vector<2x32xf32>
    %110 = arith.mulf %103, %109 : vector<2x32xf32>
    %cst_39 = arith.constant dense<0.000000e+00> : vector<2xf32>
    %111 = vector.multi_reduction <add>, %110, %cst_39 [1] : vector<2x32xf32> to vector<2xf32>
    %112 = vector.shape_cast %111 : vector<2xf32> to vector<2x1xf32>
    %cst_40 = arith.constant 3.200000e+01 : f32
    %113 = vector.broadcast %cst_40 : f32 to vector<2x1xf32>
    %114 = arith.divf %112, %113 : vector<2x1xf32>
    %115 = vector.broadcast %114 : vector<2x1xf32> to vector<2x32xf32>
    %116 = arith.subf %110, %115 : vector<2x32xf32>
    %117 = vector.broadcast %114 : vector<2x1xf32> to vector<2x32xf32>
    %118 = arith.subf %110, %117 : vector<2x32xf32>
    %119 = arith.mulf %116, %118 : vector<2x32xf32>
    %cst_41 = arith.constant dense<0.000000e+00> : vector<2xf32>
    %120 = vector.multi_reduction <add>, %119, %cst_41 [1] : vector<2x32xf32> to vector<2xf32>
    %121 = vector.shape_cast %120 : vector<2xf32> to vector<2x1xf32>
    %cst_42 = arith.constant 3.200000e+01 : f32
    %122 = vector.broadcast %cst_42 : f32 to vector<2x1xf32>
    %123 = arith.divf %121, %122 : vector<2x1xf32>
    %124 = vector.broadcast %114 : vector<2x1xf32> to vector<2x32xf32>
    %125 = arith.subf %110, %124 : vector<2x32xf32>
    %cst_43 = arith.constant 9.99999974E-6 : f32
    %126 = vector.broadcast %cst_43 : f32 to vector<2x1xf32>
    %127 = arith.addf %123, %126 : vector<2x1xf32>
    %128 = math.rsqrt %127 : vector<2x1xf32>
    %129 = vector.broadcast %128 : vector<2x1xf32> to vector<2x32xf32>
    %130 = arith.mulf %125, %129 : vector<2x32xf32>
    %131 = vector.broadcast %15 : vector<1x32xf32> to vector<2x32xf32>
    %132 = arith.mulf %130, %131 : vector<2x32xf32>
    %133 = vector.broadcast %16 : vector<1x32xf32> to vector<2x32xf32>
    %134 = arith.addf %132, %133 : vector<2x32xf32>
    %cst_44 = arith.constant dense<0.000000e+00> : vector<2xf32>
    %135 = vector.multi_reduction <add>, %108, %cst_44 [1] : vector<2x32xf32> to vector<2xf32>
    %136 = vector.shape_cast %135 : vector<2xf32> to vector<2x1xf32>
    %cst_45 = arith.constant 3.200000e+01 : f32
    %137 = vector.broadcast %cst_45 : f32 to vector<2x1xf32>
    %138 = arith.divf %136, %137 : vector<2x1xf32>
    %139 = vector.broadcast %138 : vector<2x1xf32> to vector<2x32xf32>
    %140 = arith.subf %108, %139 : vector<2x32xf32>
    %141 = vector.broadcast %138 : vector<2x1xf32> to vector<2x32xf32>
    %142 = arith.subf %108, %141 : vector<2x32xf32>
    %143 = arith.mulf %140, %142 : vector<2x32xf32>
    %cst_46 = arith.constant dense<0.000000e+00> : vector<2xf32>
    %144 = vector.multi_reduction <add>, %143, %cst_46 [1] : vector<2x32xf32> to vector<2xf32>
    %145 = vector.shape_cast %144 : vector<2xf32> to vector<2x1xf32>
    %cst_47 = arith.constant 3.200000e+01 : f32
    %146 = vector.broadcast %cst_47 : f32 to vector<2x1xf32>
    %147 = arith.divf %145, %146 : vector<2x1xf32>
    %148 = vector.broadcast %138 : vector<2x1xf32> to vector<2x32xf32>
    %149 = arith.subf %108, %148 : vector<2x32xf32>
    %cst_48 = arith.constant 9.99999974E-6 : f32
    %150 = vector.broadcast %cst_48 : f32 to vector<2x1xf32>
    %151 = arith.addf %147, %150 : vector<2x1xf32>
    %152 = math.rsqrt %151 : vector<2x1xf32>
    %153 = vector.broadcast %152 : vector<2x1xf32> to vector<2x32xf32>
    %154 = arith.mulf %149, %153 : vector<2x32xf32>
    %155 = vector.broadcast %17 : vector<1x32xf32> to vector<2x32xf32>
    %156 = arith.mulf %154, %155 : vector<2x32xf32>
    %157 = vector.broadcast %18 : vector<1x32xf32> to vector<2x32xf32>
    %158 = arith.addf %156, %157 : vector<2x32xf32>
    %c2_i32_49 = arith.constant 2 : i32
    %c2_i32_50 = arith.constant 2 : i32
    %159 = arith.muli %c2_i32_49, %c2_i32_50 : i32
    %160 = tpu.assume_multiple %159, 2 : i32
    %161 = arith.index_cast %160 : i32 to index
    %c0_51 = arith.constant 0 : index
    %162 = vector.load %arg10[%161, %c0_51] : memref<16x128xf32, #tpu.memory_space<vmem>>, vector<2x128xf32>
    %cst_52 = arith.constant dense<0.000000e+00> : vector<2x128xf32>
    %163 = tpu.matmul %134, %14, %cst_52 {dimension_numbers = #tpu.dot_dimension_numbers<[1], [0], [0], [1], [0, 0, 1, 1], [], []>} : vector<2x32xf32>, vector<32x128xf32>, vector<2x128xf32> -> vector<2x128xf32>
    %164 = arith.addf %162, %163 : vector<2x128xf32>
    %165 = arith.negf %164 : vector<2x128xf32>
    %166 = math.exp %165 : vector<2x128xf32>
    %cst_53 = arith.constant 1.000000e+00 : f32
    %167 = vector.broadcast %cst_53 : f32 to vector<2x128xf32>
    %168 = arith.addf %167, %166 : vector<2x128xf32>
    %169 = arith.divf %167, %168 : vector<2x128xf32>
    %170 = vector.extract_strided_slice %169 {offsets = [0, 0], sizes = [2, 32], strides = [1, 1]} : vector<2x128xf32> to vector<2x32xf32>
    %171 = vector.extract_strided_slice %169 {offsets = [0, 32], sizes = [2, 32], strides = [1, 1]} : vector<2x128xf32> to vector<2x32xf32>
    %172 = vector.extract_strided_slice %169 {offsets = [0, 96], sizes = [2, 32], strides = [1, 1]} : vector<2x128xf32> to vector<2x32xf32>
    %173 = vector.extract_strided_slice %164 {offsets = [0, 64], sizes = [2, 32], strides = [1, 1]} : vector<2x128xf32> to vector<2x32xf32>
    %174 = math.tanh %173 : vector<2x32xf32>
    %175 = arith.mulf %171, %158 : vector<2x32xf32>
    %176 = arith.mulf %170, %174 : vector<2x32xf32>
    %177 = arith.addf %175, %176 : vector<2x32xf32>
    %178 = math.tanh %177 : vector<2x32xf32>
    %179 = arith.mulf %172, %178 : vector<2x32xf32>
    %cst_54 = arith.constant dense<0.000000e+00> : vector<2xf32>
    %180 = vector.multi_reduction <add>, %179, %cst_54 [1] : vector<2x32xf32> to vector<2xf32>
    %181 = vector.shape_cast %180 : vector<2xf32> to vector<2x1xf32>
    %cst_55 = arith.constant 3.200000e+01 : f32
    %182 = vector.broadcast %cst_55 : f32 to vector<2x1xf32>
    %183 = arith.divf %181, %182 : vector<2x1xf32>
    %184 = vector.broadcast %183 : vector<2x1xf32> to vector<2x32xf32>
    %185 = arith.subf %179, %184 : vector<2x32xf32>
    %186 = vector.broadcast %183 : vector<2x1xf32> to vector<2x32xf32>
    %187 = arith.subf %179, %186 : vector<2x32xf32>
    %188 = arith.mulf %185, %187 : vector<2x32xf32>
    %cst_56 = arith.constant dense<0.000000e+00> : vector<2xf32>
    %189 = vector.multi_reduction <add>, %188, %cst_56 [1] : vector<2x32xf32> to vector<2xf32>
    %190 = vector.shape_cast %189 : vector<2xf32> to vector<2x1xf32>
    %cst_57 = arith.constant 3.200000e+01 : f32
    %191 = vector.broadcast %cst_57 : f32 to vector<2x1xf32>
    %192 = arith.divf %190, %191 : vector<2x1xf32>
    %193 = vector.broadcast %183 : vector<2x1xf32> to vector<2x32xf32>
    %194 = arith.subf %179, %193 : vector<2x32xf32>
    %cst_58 = arith.constant 9.99999974E-6 : f32
    %195 = vector.broadcast %cst_58 : f32 to vector<2x1xf32>
    %196 = arith.addf %192, %195 : vector<2x1xf32>
    %197 = math.rsqrt %196 : vector<2x1xf32>
    %198 = vector.broadcast %197 : vector<2x1xf32> to vector<2x32xf32>
    %199 = arith.mulf %194, %198 : vector<2x32xf32>
    %200 = vector.broadcast %15 : vector<1x32xf32> to vector<2x32xf32>
    %201 = arith.mulf %199, %200 : vector<2x32xf32>
    %202 = vector.broadcast %16 : vector<1x32xf32> to vector<2x32xf32>
    %203 = arith.addf %201, %202 : vector<2x32xf32>
    %cst_59 = arith.constant dense<0.000000e+00> : vector<2xf32>
    %204 = vector.multi_reduction <add>, %177, %cst_59 [1] : vector<2x32xf32> to vector<2xf32>
    %205 = vector.shape_cast %204 : vector<2xf32> to vector<2x1xf32>
    %cst_60 = arith.constant 3.200000e+01 : f32
    %206 = vector.broadcast %cst_60 : f32 to vector<2x1xf32>
    %207 = arith.divf %205, %206 : vector<2x1xf32>
    %208 = vector.broadcast %207 : vector<2x1xf32> to vector<2x32xf32>
    %209 = arith.subf %177, %208 : vector<2x32xf32>
    %210 = vector.broadcast %207 : vector<2x1xf32> to vector<2x32xf32>
    %211 = arith.subf %177, %210 : vector<2x32xf32>
    %212 = arith.mulf %209, %211 : vector<2x32xf32>
    %cst_61 = arith.constant dense<0.000000e+00> : vector<2xf32>
    %213 = vector.multi_reduction <add>, %212, %cst_61 [1] : vector<2x32xf32> to vector<2xf32>
    %214 = vector.shape_cast %213 : vector<2xf32> to vector<2x1xf32>
    %cst_62 = arith.constant 3.200000e+01 : f32
    %215 = vector.broadcast %cst_62 : f32 to vector<2x1xf32>
    %216 = arith.divf %214, %215 : vector<2x1xf32>
    %217 = vector.broadcast %207 : vector<2x1xf32> to vector<2x32xf32>
    %218 = arith.subf %177, %217 : vector<2x32xf32>
    %cst_63 = arith.constant 9.99999974E-6 : f32
    %219 = vector.broadcast %cst_63 : f32 to vector<2x1xf32>
    %220 = arith.addf %216, %219 : vector<2x1xf32>
    %221 = math.rsqrt %220 : vector<2x1xf32>
    %222 = vector.broadcast %221 : vector<2x1xf32> to vector<2x32xf32>
    %223 = arith.mulf %218, %222 : vector<2x32xf32>
    %224 = vector.broadcast %17 : vector<1x32xf32> to vector<2x32xf32>
    %225 = arith.mulf %223, %224 : vector<2x32xf32>
    %226 = vector.broadcast %18 : vector<1x32xf32> to vector<2x32xf32>
    %227 = arith.addf %225, %226 : vector<2x32xf32>
    %c3_i32 = arith.constant 3 : i32
    %c2_i32_64 = arith.constant 2 : i32
    %228 = arith.muli %c3_i32, %c2_i32_64 : i32
    %229 = tpu.assume_multiple %228, 2 : i32
    %230 = arith.index_cast %229 : i32 to index
    %c0_65 = arith.constant 0 : index
    %231 = vector.load %arg10[%230, %c0_65] : memref<16x128xf32, #tpu.memory_space<vmem>>, vector<2x128xf32>
    %cst_66 = arith.constant dense<0.000000e+00> : vector<2x128xf32>
    %232 = tpu.matmul %203, %14, %cst_66 {dimension_numbers = #tpu.dot_dimension_numbers<[1], [0], [0], [1], [0, 0, 1, 1], [], []>} : vector<2x32xf32>, vector<32x128xf32>, vector<2x128xf32> -> vector<2x128xf32>
    %233 = arith.addf %231, %232 : vector<2x128xf32>
    %234 = arith.negf %233 : vector<2x128xf32>
    %235 = math.exp %234 : vector<2x128xf32>
    %cst_67 = arith.constant 1.000000e+00 : f32
    %236 = vector.broadcast %cst_67 : f32 to vector<2x128xf32>
    %237 = arith.addf %236, %235 : vector<2x128xf32>
    %238 = arith.divf %236, %237 : vector<2x128xf32>
    %239 = vector.extract_strided_slice %238 {offsets = [0, 0], sizes = [2, 32], strides = [1, 1]} : vector<2x128xf32> to vector<2x32xf32>
    %240 = vector.extract_strided_slice %238 {offsets = [0, 32], sizes = [2, 32], strides = [1, 1]} : vector<2x128xf32> to vector<2x32xf32>
    %241 = vector.extract_strided_slice %238 {offsets = [0, 96], sizes = [2, 32], strides = [1, 1]} : vector<2x128xf32> to vector<2x32xf32>
    %242 = vector.extract_strided_slice %233 {offsets = [0, 64], sizes = [2, 32], strides = [1, 1]} : vector<2x128xf32> to vector<2x32xf32>
    %243 = math.tanh %242 : vector<2x32xf32>
    %244 = arith.mulf %240, %227 : vector<2x32xf32>
    %245 = arith.mulf %239, %243 : vector<2x32xf32>
    %246 = arith.addf %244, %245 : vector<2x32xf32>
    %247 = math.tanh %246 : vector<2x32xf32>
    %248 = arith.mulf %241, %247 : vector<2x32xf32>
    %cst_68 = arith.constant dense<0.000000e+00> : vector<2xf32>
    %249 = vector.multi_reduction <add>, %248, %cst_68 [1] : vector<2x32xf32> to vector<2xf32>
    %250 = vector.shape_cast %249 : vector<2xf32> to vector<2x1xf32>
    %cst_69 = arith.constant 3.200000e+01 : f32
    %251 = vector.broadcast %cst_69 : f32 to vector<2x1xf32>
    %252 = arith.divf %250, %251 : vector<2x1xf32>
    %253 = vector.broadcast %252 : vector<2x1xf32> to vector<2x32xf32>
    %254 = arith.subf %248, %253 : vector<2x32xf32>
    %255 = vector.broadcast %252 : vector<2x1xf32> to vector<2x32xf32>
    %256 = arith.subf %248, %255 : vector<2x32xf32>
    %257 = arith.mulf %254, %256 : vector<2x32xf32>
    %cst_70 = arith.constant dense<0.000000e+00> : vector<2xf32>
    %258 = vector.multi_reduction <add>, %257, %cst_70 [1] : vector<2x32xf32> to vector<2xf32>
    %259 = vector.shape_cast %258 : vector<2xf32> to vector<2x1xf32>
    %cst_71 = arith.constant 3.200000e+01 : f32
    %260 = vector.broadcast %cst_71 : f32 to vector<2x1xf32>
    %261 = arith.divf %259, %260 : vector<2x1xf32>
    %262 = vector.broadcast %252 : vector<2x1xf32> to vector<2x32xf32>
    %263 = arith.subf %248, %262 : vector<2x32xf32>
    %cst_72 = arith.constant 9.99999974E-6 : f32
    %264 = vector.broadcast %cst_72 : f32 to vector<2x1xf32>
    %265 = arith.addf %261, %264 : vector<2x1xf32>
    %266 = math.rsqrt %265 : vector<2x1xf32>
    %267 = vector.broadcast %266 : vector<2x1xf32> to vector<2x32xf32>
    %268 = arith.mulf %263, %267 : vector<2x32xf32>
    %269 = vector.broadcast %15 : vector<1x32xf32> to vector<2x32xf32>
    %270 = arith.mulf %268, %269 : vector<2x32xf32>
    %271 = vector.broadcast %16 : vector<1x32xf32> to vector<2x32xf32>
    %272 = arith.addf %270, %271 : vector<2x32xf32>
    %cst_73 = arith.constant dense<0.000000e+00> : vector<2xf32>
    %273 = vector.multi_reduction <add>, %246, %cst_73 [1] : vector<2x32xf32> to vector<2xf32>
    %274 = vector.shape_cast %273 : vector<2xf32> to vector<2x1xf32>
    %cst_74 = arith.constant 3.200000e+01 : f32
    %275 = vector.broadcast %cst_74 : f32 to vector<2x1xf32>
    %276 = arith.divf %274, %275 : vector<2x1xf32>
    %277 = vector.broadcast %276 : vector<2x1xf32> to vector<2x32xf32>
    %278 = arith.subf %246, %277 : vector<2x32xf32>
    %279 = vector.broadcast %276 : vector<2x1xf32> to vector<2x32xf32>
    %280 = arith.subf %246, %279 : vector<2x32xf32>
    %281 = arith.mulf %278, %280 : vector<2x32xf32>
    %cst_75 = arith.constant dense<0.000000e+00> : vector<2xf32>
    %282 = vector.multi_reduction <add>, %281, %cst_75 [1] : vector<2x32xf32> to vector<2xf32>
    %283 = vector.shape_cast %282 : vector<2xf32> to vector<2x1xf32>
    %cst_76 = arith.constant 3.200000e+01 : f32
    %284 = vector.broadcast %cst_76 : f32 to vector<2x1xf32>
    %285 = arith.divf %283, %284 : vector<2x1xf32>
    %286 = vector.broadcast %276 : vector<2x1xf32> to vector<2x32xf32>
    %287 = arith.subf %246, %286 : vector<2x32xf32>
    %cst_77 = arith.constant 9.99999974E-6 : f32
    %288 = vector.broadcast %cst_77 : f32 to vector<2x1xf32>
    %289 = arith.addf %285, %288 : vector<2x1xf32>
    %290 = math.rsqrt %289 : vector<2x1xf32>
    %291 = vector.broadcast %290 : vector<2x1xf32> to vector<2x32xf32>
    %292 = arith.mulf %287, %291 : vector<2x32xf32>
    %293 = vector.broadcast %17 : vector<1x32xf32> to vector<2x32xf32>
    %294 = arith.mulf %292, %293 : vector<2x32xf32>
    %295 = vector.broadcast %18 : vector<1x32xf32> to vector<2x32xf32>
    %296 = arith.addf %294, %295 : vector<2x32xf32>
    %c4_i32 = arith.constant 4 : i32
    %c2_i32_78 = arith.constant 2 : i32
    %297 = arith.muli %c4_i32, %c2_i32_78 : i32
    %298 = tpu.assume_multiple %297, 2 : i32
    %299 = arith.index_cast %298 : i32 to index
    %c0_79 = arith.constant 0 : index
    %300 = vector.load %arg10[%299, %c0_79] : memref<16x128xf32, #tpu.memory_space<vmem>>, vector<2x128xf32>
    %cst_80 = arith.constant dense<0.000000e+00> : vector<2x128xf32>
    %301 = tpu.matmul %272, %14, %cst_80 {dimension_numbers = #tpu.dot_dimension_numbers<[1], [0], [0], [1], [0, 0, 1, 1], [], []>} : vector<2x32xf32>, vector<32x128xf32>, vector<2x128xf32> -> vector<2x128xf32>
    %302 = arith.addf %300, %301 : vector<2x128xf32>
    %303 = arith.negf %302 : vector<2x128xf32>
    %304 = math.exp %303 : vector<2x128xf32>
    %cst_81 = arith.constant 1.000000e+00 : f32
    %305 = vector.broadcast %cst_81 : f32 to vector<2x128xf32>
    %306 = arith.addf %305, %304 : vector<2x128xf32>
    %307 = arith.divf %305, %306 : vector<2x128xf32>
    %308 = vector.extract_strided_slice %307 {offsets = [0, 0], sizes = [2, 32], strides = [1, 1]} : vector<2x128xf32> to vector<2x32xf32>
    %309 = vector.extract_strided_slice %307 {offsets = [0, 32], sizes = [2, 32], strides = [1, 1]} : vector<2x128xf32> to vector<2x32xf32>
    %310 = vector.extract_strided_slice %307 {offsets = [0, 96], sizes = [2, 32], strides = [1, 1]} : vector<2x128xf32> to vector<2x32xf32>
    %311 = vector.extract_strided_slice %302 {offsets = [0, 64], sizes = [2, 32], strides = [1, 1]} : vector<2x128xf32> to vector<2x32xf32>
    %312 = math.tanh %311 : vector<2x32xf32>
    %313 = arith.mulf %309, %296 : vector<2x32xf32>
    %314 = arith.mulf %308, %312 : vector<2x32xf32>
    %315 = arith.addf %313, %314 : vector<2x32xf32>
    %316 = math.tanh %315 : vector<2x32xf32>
    %317 = arith.mulf %310, %316 : vector<2x32xf32>
    %cst_82 = arith.constant dense<0.000000e+00> : vector<2xf32>
    %318 = vector.multi_reduction <add>, %317, %cst_82 [1] : vector<2x32xf32> to vector<2xf32>
    %319 = vector.shape_cast %318 : vector<2xf32> to vector<2x1xf32>
    %cst_83 = arith.constant 3.200000e+01 : f32
    %320 = vector.broadcast %cst_83 : f32 to vector<2x1xf32>
    %321 = arith.divf %319, %320 : vector<2x1xf32>
    %322 = vector.broadcast %321 : vector<2x1xf32> to vector<2x32xf32>
    %323 = arith.subf %317, %322 : vector<2x32xf32>
    %324 = vector.broadcast %321 : vector<2x1xf32> to vector<2x32xf32>
    %325 = arith.subf %317, %324 : vector<2x32xf32>
    %326 = arith.mulf %323, %325 : vector<2x32xf32>
    %cst_84 = arith.constant dense<0.000000e+00> : vector<2xf32>
    %327 = vector.multi_reduction <add>, %326, %cst_84 [1] : vector<2x32xf32> to vector<2xf32>
    %328 = vector.shape_cast %327 : vector<2xf32> to vector<2x1xf32>
    %cst_85 = arith.constant 3.200000e+01 : f32
    %329 = vector.broadcast %cst_85 : f32 to vector<2x1xf32>
    %330 = arith.divf %328, %329 : vector<2x1xf32>
    %331 = vector.broadcast %321 : vector<2x1xf32> to vector<2x32xf32>
    %332 = arith.subf %317, %331 : vector<2x32xf32>
    %cst_86 = arith.constant 9.99999974E-6 : f32
    %333 = vector.broadcast %cst_86 : f32 to vector<2x1xf32>
    %334 = arith.addf %330, %333 : vector<2x1xf32>
    %335 = math.rsqrt %334 : vector<2x1xf32>
    %336 = vector.broadcast %335 : vector<2x1xf32> to vector<2x32xf32>
    %337 = arith.mulf %332, %336 : vector<2x32xf32>
    %338 = vector.broadcast %15 : vector<1x32xf32> to vector<2x32xf32>
    %339 = arith.mulf %337, %338 : vector<2x32xf32>
    %340 = vector.broadcast %16 : vector<1x32xf32> to vector<2x32xf32>
    %341 = arith.addf %339, %340 : vector<2x32xf32>
    %cst_87 = arith.constant dense<0.000000e+00> : vector<2xf32>
    %342 = vector.multi_reduction <add>, %315, %cst_87 [1] : vector<2x32xf32> to vector<2xf32>
    %343 = vector.shape_cast %342 : vector<2xf32> to vector<2x1xf32>
    %cst_88 = arith.constant 3.200000e+01 : f32
    %344 = vector.broadcast %cst_88 : f32 to vector<2x1xf32>
    %345 = arith.divf %343, %344 : vector<2x1xf32>
    %346 = vector.broadcast %345 : vector<2x1xf32> to vector<2x32xf32>
    %347 = arith.subf %315, %346 : vector<2x32xf32>
    %348 = vector.broadcast %345 : vector<2x1xf32> to vector<2x32xf32>
    %349 = arith.subf %315, %348 : vector<2x32xf32>
    %350 = arith.mulf %347, %349 : vector<2x32xf32>
    %cst_89 = arith.constant dense<0.000000e+00> : vector<2xf32>
    %351 = vector.multi_reduction <add>, %350, %cst_89 [1] : vector<2x32xf32> to vector<2xf32>
    %352 = vector.shape_cast %351 : vector<2xf32> to vector<2x1xf32>
    %cst_90 = arith.constant 3.200000e+01 : f32
    %353 = vector.broadcast %cst_90 : f32 to vector<2x1xf32>
    %354 = arith.divf %352, %353 : vector<2x1xf32>
    %355 = vector.broadcast %345 : vector<2x1xf32> to vector<2x32xf32>
    %356 = arith.subf %315, %355 : vector<2x32xf32>
    %cst_91 = arith.constant 9.99999974E-6 : f32
    %357 = vector.broadcast %cst_91 : f32 to vector<2x1xf32>
    %358 = arith.addf %354, %357 : vector<2x1xf32>
    %359 = math.rsqrt %358 : vector<2x1xf32>
    %360 = vector.broadcast %359 : vector<2x1xf32> to vector<2x32xf32>
    %361 = arith.mulf %356, %360 : vector<2x32xf32>
    %362 = vector.broadcast %17 : vector<1x32xf32> to vector<2x32xf32>
    %363 = arith.mulf %361, %362 : vector<2x32xf32>
    %364 = vector.broadcast %18 : vector<1x32xf32> to vector<2x32xf32>
    %365 = arith.addf %363, %364 : vector<2x32xf32>
    %c5_i32 = arith.constant 5 : i32
    %c2_i32_92 = arith.constant 2 : i32
    %366 = arith.muli %c5_i32, %c2_i32_92 : i32
    %367 = tpu.assume_multiple %366, 2 : i32
    %368 = arith.index_cast %367 : i32 to index
    %c0_93 = arith.constant 0 : index
    %369 = vector.load %arg10[%368, %c0_93] : memref<16x128xf32, #tpu.memory_space<vmem>>, vector<2x128xf32>
    %cst_94 = arith.constant dense<0.000000e+00> : vector<2x128xf32>
    %370 = tpu.matmul %341, %14, %cst_94 {dimension_numbers = #tpu.dot_dimension_numbers<[1], [0], [0], [1], [0, 0, 1, 1], [], []>} : vector<2x32xf32>, vector<32x128xf32>, vector<2x128xf32> -> vector<2x128xf32>
    %371 = arith.addf %369, %370 : vector<2x128xf32>
    %372 = arith.negf %371 : vector<2x128xf32>
    %373 = math.exp %372 : vector<2x128xf32>
    %cst_95 = arith.constant 1.000000e+00 : f32
    %374 = vector.broadcast %cst_95 : f32 to vector<2x128xf32>
    %375 = arith.addf %374, %373 : vector<2x128xf32>
    %376 = arith.divf %374, %375 : vector<2x128xf32>
    %377 = vector.extract_strided_slice %376 {offsets = [0, 0], sizes = [2, 32], strides = [1, 1]} : vector<2x128xf32> to vector<2x32xf32>
    %378 = vector.extract_strided_slice %376 {offsets = [0, 32], sizes = [2, 32], strides = [1, 1]} : vector<2x128xf32> to vector<2x32xf32>
    %379 = vector.extract_strided_slice %376 {offsets = [0, 96], sizes = [2, 32], strides = [1, 1]} : vector<2x128xf32> to vector<2x32xf32>
    %380 = vector.extract_strided_slice %371 {offsets = [0, 64], sizes = [2, 32], strides = [1, 1]} : vector<2x128xf32> to vector<2x32xf32>
    %381 = math.tanh %380 : vector<2x32xf32>
    %382 = arith.mulf %378, %365 : vector<2x32xf32>
    %383 = arith.mulf %377, %381 : vector<2x32xf32>
    %384 = arith.addf %382, %383 : vector<2x32xf32>
    %385 = math.tanh %384 : vector<2x32xf32>
    %386 = arith.mulf %379, %385 : vector<2x32xf32>
    %cst_96 = arith.constant dense<0.000000e+00> : vector<2xf32>
    %387 = vector.multi_reduction <add>, %386, %cst_96 [1] : vector<2x32xf32> to vector<2xf32>
    %388 = vector.shape_cast %387 : vector<2xf32> to vector<2x1xf32>
    %cst_97 = arith.constant 3.200000e+01 : f32
    %389 = vector.broadcast %cst_97 : f32 to vector<2x1xf32>
    %390 = arith.divf %388, %389 : vector<2x1xf32>
    %391 = vector.broadcast %390 : vector<2x1xf32> to vector<2x32xf32>
    %392 = arith.subf %386, %391 : vector<2x32xf32>
    %393 = vector.broadcast %390 : vector<2x1xf32> to vector<2x32xf32>
    %394 = arith.subf %386, %393 : vector<2x32xf32>
    %395 = arith.mulf %392, %394 : vector<2x32xf32>
    %cst_98 = arith.constant dense<0.000000e+00> : vector<2xf32>
    %396 = vector.multi_reduction <add>, %395, %cst_98 [1] : vector<2x32xf32> to vector<2xf32>
    %397 = vector.shape_cast %396 : vector<2xf32> to vector<2x1xf32>
    %cst_99 = arith.constant 3.200000e+01 : f32
    %398 = vector.broadcast %cst_99 : f32 to vector<2x1xf32>
    %399 = arith.divf %397, %398 : vector<2x1xf32>
    %400 = vector.broadcast %390 : vector<2x1xf32> to vector<2x32xf32>
    %401 = arith.subf %386, %400 : vector<2x32xf32>
    %cst_100 = arith.constant 9.99999974E-6 : f32
    %402 = vector.broadcast %cst_100 : f32 to vector<2x1xf32>
    %403 = arith.addf %399, %402 : vector<2x1xf32>
    %404 = math.rsqrt %403 : vector<2x1xf32>
    %405 = vector.broadcast %404 : vector<2x1xf32> to vector<2x32xf32>
    %406 = arith.mulf %401, %405 : vector<2x32xf32>
    %407 = vector.broadcast %15 : vector<1x32xf32> to vector<2x32xf32>
    %408 = arith.mulf %406, %407 : vector<2x32xf32>
    %409 = vector.broadcast %16 : vector<1x32xf32> to vector<2x32xf32>
    %410 = arith.addf %408, %409 : vector<2x32xf32>
    %cst_101 = arith.constant dense<0.000000e+00> : vector<2xf32>
    %411 = vector.multi_reduction <add>, %384, %cst_101 [1] : vector<2x32xf32> to vector<2xf32>
    %412 = vector.shape_cast %411 : vector<2xf32> to vector<2x1xf32>
    %cst_102 = arith.constant 3.200000e+01 : f32
    %413 = vector.broadcast %cst_102 : f32 to vector<2x1xf32>
    %414 = arith.divf %412, %413 : vector<2x1xf32>
    %415 = vector.broadcast %414 : vector<2x1xf32> to vector<2x32xf32>
    %416 = arith.subf %384, %415 : vector<2x32xf32>
    %417 = vector.broadcast %414 : vector<2x1xf32> to vector<2x32xf32>
    %418 = arith.subf %384, %417 : vector<2x32xf32>
    %419 = arith.mulf %416, %418 : vector<2x32xf32>
    %cst_103 = arith.constant dense<0.000000e+00> : vector<2xf32>
    %420 = vector.multi_reduction <add>, %419, %cst_103 [1] : vector<2x32xf32> to vector<2xf32>
    %421 = vector.shape_cast %420 : vector<2xf32> to vector<2x1xf32>
    %cst_104 = arith.constant 3.200000e+01 : f32
    %422 = vector.broadcast %cst_104 : f32 to vector<2x1xf32>
    %423 = arith.divf %421, %422 : vector<2x1xf32>
    %424 = vector.broadcast %414 : vector<2x1xf32> to vector<2x32xf32>
    %425 = arith.subf %384, %424 : vector<2x32xf32>
    %cst_105 = arith.constant 9.99999974E-6 : f32
    %426 = vector.broadcast %cst_105 : f32 to vector<2x1xf32>
    %427 = arith.addf %423, %426 : vector<2x1xf32>
    %428 = math.rsqrt %427 : vector<2x1xf32>
    %429 = vector.broadcast %428 : vector<2x1xf32> to vector<2x32xf32>
    %430 = arith.mulf %425, %429 : vector<2x32xf32>
    %431 = vector.broadcast %17 : vector<1x32xf32> to vector<2x32xf32>
    %432 = arith.mulf %430, %431 : vector<2x32xf32>
    %433 = vector.broadcast %18 : vector<1x32xf32> to vector<2x32xf32>
    %434 = arith.addf %432, %433 : vector<2x32xf32>
    %c6_i32 = arith.constant 6 : i32
    %c2_i32_106 = arith.constant 2 : i32
    %435 = arith.muli %c6_i32, %c2_i32_106 : i32
    %436 = tpu.assume_multiple %435, 2 : i32
    %437 = arith.index_cast %436 : i32 to index
    %c0_107 = arith.constant 0 : index
    %438 = vector.load %arg10[%437, %c0_107] : memref<16x128xf32, #tpu.memory_space<vmem>>, vector<2x128xf32>
    %cst_108 = arith.constant dense<0.000000e+00> : vector<2x128xf32>
    %439 = tpu.matmul %410, %14, %cst_108 {dimension_numbers = #tpu.dot_dimension_numbers<[1], [0], [0], [1], [0, 0, 1, 1], [], []>} : vector<2x32xf32>, vector<32x128xf32>, vector<2x128xf32> -> vector<2x128xf32>
    %440 = arith.addf %438, %439 : vector<2x128xf32>
    %441 = arith.negf %440 : vector<2x128xf32>
    %442 = math.exp %441 : vector<2x128xf32>
    %cst_109 = arith.constant 1.000000e+00 : f32
    %443 = vector.broadcast %cst_109 : f32 to vector<2x128xf32>
    %444 = arith.addf %443, %442 : vector<2x128xf32>
    %445 = arith.divf %443, %444 : vector<2x128xf32>
    %446 = vector.extract_strided_slice %445 {offsets = [0, 0], sizes = [2, 32], strides = [1, 1]} : vector<2x128xf32> to vector<2x32xf32>
    %447 = vector.extract_strided_slice %445 {offsets = [0, 32], sizes = [2, 32], strides = [1, 1]} : vector<2x128xf32> to vector<2x32xf32>
    %448 = vector.extract_strided_slice %445 {offsets = [0, 96], sizes = [2, 32], strides = [1, 1]} : vector<2x128xf32> to vector<2x32xf32>
    %449 = vector.extract_strided_slice %440 {offsets = [0, 64], sizes = [2, 32], strides = [1, 1]} : vector<2x128xf32> to vector<2x32xf32>
    %450 = math.tanh %449 : vector<2x32xf32>
    %451 = arith.mulf %447, %434 : vector<2x32xf32>
    %452 = arith.mulf %446, %450 : vector<2x32xf32>
    %453 = arith.addf %451, %452 : vector<2x32xf32>
    %454 = math.tanh %453 : vector<2x32xf32>
    %455 = arith.mulf %448, %454 : vector<2x32xf32>
    %cst_110 = arith.constant dense<0.000000e+00> : vector<2xf32>
    %456 = vector.multi_reduction <add>, %455, %cst_110 [1] : vector<2x32xf32> to vector<2xf32>
    %457 = vector.shape_cast %456 : vector<2xf32> to vector<2x1xf32>
    %cst_111 = arith.constant 3.200000e+01 : f32
    %458 = vector.broadcast %cst_111 : f32 to vector<2x1xf32>
    %459 = arith.divf %457, %458 : vector<2x1xf32>
    %460 = vector.broadcast %459 : vector<2x1xf32> to vector<2x32xf32>
    %461 = arith.subf %455, %460 : vector<2x32xf32>
    %462 = vector.broadcast %459 : vector<2x1xf32> to vector<2x32xf32>
    %463 = arith.subf %455, %462 : vector<2x32xf32>
    %464 = arith.mulf %461, %463 : vector<2x32xf32>
    %cst_112 = arith.constant dense<0.000000e+00> : vector<2xf32>
    %465 = vector.multi_reduction <add>, %464, %cst_112 [1] : vector<2x32xf32> to vector<2xf32>
    %466 = vector.shape_cast %465 : vector<2xf32> to vector<2x1xf32>
    %cst_113 = arith.constant 3.200000e+01 : f32
    %467 = vector.broadcast %cst_113 : f32 to vector<2x1xf32>
    %468 = arith.divf %466, %467 : vector<2x1xf32>
    %469 = vector.broadcast %459 : vector<2x1xf32> to vector<2x32xf32>
    %470 = arith.subf %455, %469 : vector<2x32xf32>
    %cst_114 = arith.constant 9.99999974E-6 : f32
    %471 = vector.broadcast %cst_114 : f32 to vector<2x1xf32>
    %472 = arith.addf %468, %471 : vector<2x1xf32>
    %473 = math.rsqrt %472 : vector<2x1xf32>
    %474 = vector.broadcast %473 : vector<2x1xf32> to vector<2x32xf32>
    %475 = arith.mulf %470, %474 : vector<2x32xf32>
    %476 = vector.broadcast %15 : vector<1x32xf32> to vector<2x32xf32>
    %477 = arith.mulf %475, %476 : vector<2x32xf32>
    %478 = vector.broadcast %16 : vector<1x32xf32> to vector<2x32xf32>
    %479 = arith.addf %477, %478 : vector<2x32xf32>
    %cst_115 = arith.constant dense<0.000000e+00> : vector<2xf32>
    %480 = vector.multi_reduction <add>, %453, %cst_115 [1] : vector<2x32xf32> to vector<2xf32>
    %481 = vector.shape_cast %480 : vector<2xf32> to vector<2x1xf32>
    %cst_116 = arith.constant 3.200000e+01 : f32
    %482 = vector.broadcast %cst_116 : f32 to vector<2x1xf32>
    %483 = arith.divf %481, %482 : vector<2x1xf32>
    %484 = vector.broadcast %483 : vector<2x1xf32> to vector<2x32xf32>
    %485 = arith.subf %453, %484 : vector<2x32xf32>
    %486 = vector.broadcast %483 : vector<2x1xf32> to vector<2x32xf32>
    %487 = arith.subf %453, %486 : vector<2x32xf32>
    %488 = arith.mulf %485, %487 : vector<2x32xf32>
    %cst_117 = arith.constant dense<0.000000e+00> : vector<2xf32>
    %489 = vector.multi_reduction <add>, %488, %cst_117 [1] : vector<2x32xf32> to vector<2xf32>
    %490 = vector.shape_cast %489 : vector<2xf32> to vector<2x1xf32>
    %cst_118 = arith.constant 3.200000e+01 : f32
    %491 = vector.broadcast %cst_118 : f32 to vector<2x1xf32>
    %492 = arith.divf %490, %491 : vector<2x1xf32>
    %493 = vector.broadcast %483 : vector<2x1xf32> to vector<2x32xf32>
    %494 = arith.subf %453, %493 : vector<2x32xf32>
    %cst_119 = arith.constant 9.99999974E-6 : f32
    %495 = vector.broadcast %cst_119 : f32 to vector<2x1xf32>
    %496 = arith.addf %492, %495 : vector<2x1xf32>
    %497 = math.rsqrt %496 : vector<2x1xf32>
    %498 = vector.broadcast %497 : vector<2x1xf32> to vector<2x32xf32>
    %499 = arith.mulf %494, %498 : vector<2x32xf32>
    %500 = vector.broadcast %17 : vector<1x32xf32> to vector<2x32xf32>
    %501 = arith.mulf %499, %500 : vector<2x32xf32>
    %502 = vector.broadcast %18 : vector<1x32xf32> to vector<2x32xf32>
    %503 = arith.addf %501, %502 : vector<2x32xf32>
    %c7_i32 = arith.constant 7 : i32
    %c2_i32_120 = arith.constant 2 : i32
    %504 = arith.muli %c7_i32, %c2_i32_120 : i32
    %505 = tpu.assume_multiple %504, 2 : i32
    %506 = arith.index_cast %505 : i32 to index
    %c0_121 = arith.constant 0 : index
    %507 = vector.load %arg10[%506, %c0_121] : memref<16x128xf32, #tpu.memory_space<vmem>>, vector<2x128xf32>
    %cst_122 = arith.constant dense<0.000000e+00> : vector<2x128xf32>
    %508 = tpu.matmul %479, %14, %cst_122 {dimension_numbers = #tpu.dot_dimension_numbers<[1], [0], [0], [1], [0, 0, 1, 1], [], []>} : vector<2x32xf32>, vector<32x128xf32>, vector<2x128xf32> -> vector<2x128xf32>
    %509 = arith.addf %507, %508 : vector<2x128xf32>
    %510 = arith.negf %509 : vector<2x128xf32>
    %511 = math.exp %510 : vector<2x128xf32>
    %cst_123 = arith.constant 1.000000e+00 : f32
    %512 = vector.broadcast %cst_123 : f32 to vector<2x128xf32>
    %513 = arith.addf %512, %511 : vector<2x128xf32>
    %514 = arith.divf %512, %513 : vector<2x128xf32>
    %515 = vector.extract_strided_slice %514 {offsets = [0, 0], sizes = [2, 32], strides = [1, 1]} : vector<2x128xf32> to vector<2x32xf32>
    %516 = vector.extract_strided_slice %514 {offsets = [0, 32], sizes = [2, 32], strides = [1, 1]} : vector<2x128xf32> to vector<2x32xf32>
    %517 = vector.extract_strided_slice %514 {offsets = [0, 96], sizes = [2, 32], strides = [1, 1]} : vector<2x128xf32> to vector<2x32xf32>
    %518 = vector.extract_strided_slice %509 {offsets = [0, 64], sizes = [2, 32], strides = [1, 1]} : vector<2x128xf32> to vector<2x32xf32>
    %519 = math.tanh %518 : vector<2x32xf32>
    %520 = arith.mulf %516, %503 : vector<2x32xf32>
    %521 = arith.mulf %515, %519 : vector<2x32xf32>
    %522 = arith.addf %520, %521 : vector<2x32xf32>
    %523 = math.tanh %522 : vector<2x32xf32>
    %524 = arith.mulf %517, %523 : vector<2x32xf32>
    %cst_124 = arith.constant dense<0.000000e+00> : vector<2xf32>
    %525 = vector.multi_reduction <add>, %524, %cst_124 [1] : vector<2x32xf32> to vector<2xf32>
    %526 = vector.shape_cast %525 : vector<2xf32> to vector<2x1xf32>
    %cst_125 = arith.constant 3.200000e+01 : f32
    %527 = vector.broadcast %cst_125 : f32 to vector<2x1xf32>
    %528 = arith.divf %526, %527 : vector<2x1xf32>
    %529 = vector.broadcast %528 : vector<2x1xf32> to vector<2x32xf32>
    %530 = arith.subf %524, %529 : vector<2x32xf32>
    %531 = vector.broadcast %528 : vector<2x1xf32> to vector<2x32xf32>
    %532 = arith.subf %524, %531 : vector<2x32xf32>
    %533 = arith.mulf %530, %532 : vector<2x32xf32>
    %cst_126 = arith.constant dense<0.000000e+00> : vector<2xf32>
    %534 = vector.multi_reduction <add>, %533, %cst_126 [1] : vector<2x32xf32> to vector<2xf32>
    %535 = vector.shape_cast %534 : vector<2xf32> to vector<2x1xf32>
    %cst_127 = arith.constant 3.200000e+01 : f32
    %536 = vector.broadcast %cst_127 : f32 to vector<2x1xf32>
    %537 = arith.divf %535, %536 : vector<2x1xf32>
    %538 = vector.broadcast %528 : vector<2x1xf32> to vector<2x32xf32>
    %539 = arith.subf %524, %538 : vector<2x32xf32>
    %cst_128 = arith.constant 9.99999974E-6 : f32
    %540 = vector.broadcast %cst_128 : f32 to vector<2x1xf32>
    %541 = arith.addf %537, %540 : vector<2x1xf32>
    %542 = math.rsqrt %541 : vector<2x1xf32>
    %543 = vector.broadcast %542 : vector<2x1xf32> to vector<2x32xf32>
    %544 = arith.mulf %539, %543 : vector<2x32xf32>
    %545 = vector.broadcast %15 : vector<1x32xf32> to vector<2x32xf32>
    %546 = arith.mulf %544, %545 : vector<2x32xf32>
    %547 = vector.broadcast %16 : vector<1x32xf32> to vector<2x32xf32>
    %548 = arith.addf %546, %547 : vector<2x32xf32>
    %cst_129 = arith.constant dense<0.000000e+00> : vector<2xf32>
    %549 = vector.multi_reduction <add>, %522, %cst_129 [1] : vector<2x32xf32> to vector<2xf32>
    %550 = vector.shape_cast %549 : vector<2xf32> to vector<2x1xf32>
    %cst_130 = arith.constant 3.200000e+01 : f32
    %551 = vector.broadcast %cst_130 : f32 to vector<2x1xf32>
    %552 = arith.divf %550, %551 : vector<2x1xf32>
    %553 = vector.broadcast %552 : vector<2x1xf32> to vector<2x32xf32>
    %554 = arith.subf %522, %553 : vector<2x32xf32>
    %555 = vector.broadcast %552 : vector<2x1xf32> to vector<2x32xf32>
    %556 = arith.subf %522, %555 : vector<2x32xf32>
    %557 = arith.mulf %554, %556 : vector<2x32xf32>
    %cst_131 = arith.constant dense<0.000000e+00> : vector<2xf32>
    %558 = vector.multi_reduction <add>, %557, %cst_131 [1] : vector<2x32xf32> to vector<2xf32>
    %559 = vector.shape_cast %558 : vector<2xf32> to vector<2x1xf32>
    %cst_132 = arith.constant 3.200000e+01 : f32
    %560 = vector.broadcast %cst_132 : f32 to vector<2x1xf32>
    %561 = arith.divf %559, %560 : vector<2x1xf32>
    %562 = vector.broadcast %552 : vector<2x1xf32> to vector<2x32xf32>
    %563 = arith.subf %522, %562 : vector<2x32xf32>
    %cst_133 = arith.constant 9.99999974E-6 : f32
    %564 = vector.broadcast %cst_133 : f32 to vector<2x1xf32>
    %565 = arith.addf %561, %564 : vector<2x1xf32>
    %566 = math.rsqrt %565 : vector<2x1xf32>
    %567 = vector.broadcast %566 : vector<2x1xf32> to vector<2x32xf32>
    %568 = arith.mulf %563, %567 : vector<2x32xf32>
    %569 = vector.broadcast %17 : vector<1x32xf32> to vector<2x32xf32>
    %570 = arith.mulf %568, %569 : vector<2x32xf32>
    %571 = vector.broadcast %18 : vector<1x32xf32> to vector<2x32xf32>
    %572 = arith.addf %570, %571 : vector<2x32xf32>
    %c8_i32 = arith.constant 8 : i32
    %c0_134 = arith.constant 0 : index
    %c0_135 = arith.constant 0 : index
    %573 = vector.load %arg9[%c0_134, %c0_135] : memref<2x32xf32, #tpu.memory_space<vmem>>, vector<2x32xf32>
    tpu.vector_store %arg9[%c0_134, %c0_135], %548 {strides = array<i32>} : memref<2x32xf32, #tpu.memory_space<vmem>>, vector<2x32xf32>,
    return
  }
}

</mosaic_0001>

<llo_original>
// kernel: conditional_lstm_forward.1
$region0: #{conditional_lstm_forward.1}
  #allocation0 [shape = 'u32[]', space=smem, size = 0x4, offset = 0x4, fixed_abs, tag = 'smem constant byte address 0x4 - core index']
  #allocation1 [shape = 'u32[72,128]{1,0:T(1,128)}', space=vmem, size = 0x9000, scoped, tag = 'internal scratch']
  #allocation2 [shape = 'f32[16,128]{1,0:T(8,128)}', space=vmem, size = 0x2000, scoped, tag = 'scratch operand']
  %s0 = inlined_call_operand.vmem [shape: s32[16,1], index: 0, kind: input, shape index: {}]
  %s1 = inlined_call_operand.hbm [shape: f32[16,32], index: 1, kind: input, shape index: {}]
  %s2 = inlined_call_operand.vmem [shape: f32[32,128], index: 2, kind: input, shape index: {}]
  %s3 = inlined_call_operand.hbm [shape: f32[32,128], index: 3, kind: input, shape index: {}]
  %s4 = inlined_call_operand.vmem [shape: f32[1,128], index: 4, kind: input, shape index: {}]
  %s5 = inlined_call_operand.vmem [shape: f32[1,32], index: 5, kind: input, shape index: {}]
  %s6 = inlined_call_operand.vmem [shape: f32[1,32], index: 6, kind: input, shape index: {}]
  %s7 = inlined_call_operand.vmem [shape: f32[1,32], index: 7, kind: input, shape index: {}]
  %s8 = inlined_call_operand.vmem [shape: f32[1,32], index: 8, kind: input, shape index: {}]
  %s9 = inlined_call_operand.hbm [shape: f32[2,32], index: 9, kind: output, shape index: {}]
  %s10 = sld [smem:[#allocation0]]
  $region54: #{conditional_lstm_forward.1} parent=0
    _
  %s12 = ssub.s32 1, %s10
  %s13 = scalar_select 0, %s12, %s10
  $region1: #{conditional_lstm_forward.1} parent=0
    #allocation3 [shape = 'u8[8192]{0}', space=vmem, size = 0x2000, scoped, tag = 'input window, operand 1, single buffered']
    #allocation4 [shape = 's32[1]{0}', space=sflag, size = 0x4, scoped, tag = 'scoped memory for conditional_lstm_forward.1']
    #allocation5 [shape = 's32[1]{0}', space=sflag, size = 0x4, scoped, tag = 'scoped memory for conditional_lstm_forward.1']
    #allocation6 [shape = 'u8[16384]{0}', space=vmem, size = 0x4000, scoped, tag = 'input window, operand 3, single buffered']
    #allocation7 [shape = 's32[1]{0}', space=sflag, size = 0x4, scoped, tag = 'scoped memory for conditional_lstm_forward.1']
    #allocation8 [shape = 'u8[1024]{0}', space=vmem, size = 0x400, scoped, tag = 'output window, operand 0, single buffered']
    %14 = vsyncpa [#allocation4], 0
    %15 = vsyncpa [#allocation7], 0
    %16 = vsyncpa [#allocation5], 0
    // Predicated region
    $region2: #{conditional_lstm_forward.1} parent=1 // pred_check
      _
    $region3: #{conditional_lstm_forward.1} parent=1 // pred_check_branch
      %18 = sbr.rel (0) target = $region5
    $region4: #{conditional_lstm_forward.1} parent=1 // pred_region
      _
    $region5: #{conditional_lstm_forward.1} parent=1 // pred_fallthru
      _
    // Predicated region
    $region6: #{conditional_lstm_forward.1} parent=1 // pred_check
      _
    $region7: #{conditional_lstm_forward.1} parent=1 // pred_check_branch
      %20 = sbr.rel (0) target = $region9
    $region8: #{conditional_lstm_forward.1} parent=1 // pred_region
      %22 = vsyncadd [#allocation4], 0
      %s23 = sshll.u32 %s1, 4
      %s24 = int_to_ptr.hbm [resolvable:$true] %s23
      %s25 = sshll.u32 [#allocation3], 4
      %s26 = int_to_ptr.vmem [resolvable:$true] %s25
      %31 = dma.hbm_to_vmem [thread:$0]  %s24, 256, %s26, [#allocation4], 128, 128, 8
    $region9: #{conditional_lstm_forward.1} parent=1 // pred_fallthru
      _
    // Predicated region
    $region10: #{conditional_lstm_forward.1} parent=1 // pred_check
      _
    $region11: #{conditional_lstm_forward.1} parent=1 // pred_check_branch
      %33 = sbr.rel (0) target = $region13
    $region12: #{conditional_lstm_forward.1} parent=1 // pred_region
      _
    $region13: #{conditional_lstm_forward.1} parent=1 // pred_fallthru
      _
    // Predicated region
    $region14: #{conditional_lstm_forward.1} parent=1 // pred_check
      _
    $region15: #{conditional_lstm_forward.1} parent=1 // pred_check_branch
      %35 = sbr.rel (0) target = $region17
    $region16: #{conditional_lstm_forward.1} parent=1 // pred_region
      %37 = vsyncadd [#allocation7], 0
      %s38 = sshll.u32 %s3, 4
      %s39 = int_to_ptr.hbm [resolvable:$true] %s38
      %s40 = sshll.u32 [#allocation6], 4
      %s41 = int_to_ptr.vmem [resolvable:$true] %s40
      %46 = dma.hbm_to_vmem [thread:$0]  %s39, 512, %s41, [#allocation7], 128, 128, 8
    $region17: #{conditional_lstm_forward.1} parent=1 // pred_fallthru
      _
    // Predicated region
    $region18: #{conditional_lstm_forward.1} parent=1 // pred_check
      _
    $region19: #{conditional_lstm_forward.1} parent=1 // pred_check_branch
      %48 = sbr.rel (0) target = $region21
    $region20: #{conditional_lstm_forward.1} parent=1 // pred_region
      _
    $region21: #{conditional_lstm_forward.1} parent=1 // pred_fallthru
      _
    // Predicated region
    $region22: #{conditional_lstm_forward.1} parent=1 // pred_check
      _
    $region23: #{conditional_lstm_forward.1} parent=1 // pred_check_branch
      %50 = sbr.rel (0) target = $region25
    $region24: #{conditional_lstm_forward.1} parent=1 // pred_region
      _
    $region25: #{conditional_lstm_forward.1} parent=1 // pred_fallthru
      _
    // Predicated region
    $region26: #{conditional_lstm_forward.1} parent=1 // pred_check
      _
    $region27: #{conditional_lstm_forward.1} parent=1 // pred_check_branch
      %52 = sbr.rel (0) target = $region29
    $region28: #{conditional_lstm_forward.1} parent=1 // pred_region
      _
    $region29: #{conditional_lstm_forward.1} parent=1 // pred_fallthru
      _
    // Predicated region
    $region30: #{conditional_lstm_forward.1} parent=1 // pred_check
      _
    $region31: #{conditional_lstm_forward.1} parent=1 // pred_check_branch
      %54 = sbr.rel (0) target = $region33
    $region32: #{conditional_lstm_forward.1} parent=1 // pred_region
      _
    $region33: #{conditional_lstm_forward.1} parent=1 // pred_fallthru
      _
    // Predicated region
    $region34: #{conditional_lstm_forward.1} parent=1 // pred_check
      _
    $region35: #{conditional_lstm_forward.1} parent=1 // pred_check_branch
      %56 = sbr.rel (0) target = $region37
    $region36: #{conditional_lstm_forward.1} parent=1 // pred_region
      _
    $region37: #{conditional_lstm_forward.1} parent=1 // pred_fallthru
      _
    // Predicated region
    $region38: #{conditional_lstm_forward.1} parent=1 // pred_check
      _
    $region39: #{conditional_lstm_forward.1} parent=1 // pred_check_branch
      %58 = sbr.rel (0) target = $region41
    $region40: #{conditional_lstm_forward.1} parent=1 // pred_region
      %60 = dma.done [#allocation4], 256
    $region41: #{conditional_lstm_forward.1} parent=1 // pred_fallthru
      _
    // Predicated region
    $region42: #{conditional_lstm_forward.1} parent=1 // pred_check
      _
    $region43: #{conditional_lstm_forward.1} parent=1 // pred_check_branch
      %62 = sbr.rel (0) target = $region45
    $region44: #{conditional_lstm_forward.1} parent=1 // pred_region
      %64 = dma.done [#allocation7], 512
    $region45: #{conditional_lstm_forward.1} parent=1 // pred_fallthru
      _
    %v65 = vld [vmem:[%s0] sm:$0xff]
    %v66 = vld [vmem:[%s0 + $0x8] sm:$0xff]
    %v67 = vlaneseq
    %v68 = vand.u32 %v67, 127
    %69 = vset.pattern.permute.xlu0 0
    %70 = vperm.xlu0 %69, %v65
    %v71 = vpop.permute.xlu0 %70
    %72 = vset.pattern.permute.xlu0 0
    %73 = vperm.xlu0 %72, %v66
    %v74 = vpop.permute.xlu0 %73
    %vm75 = vcmp.eq.s32.totalorder %v71, %v68
    %vm76 = vcmp.eq.s32.totalorder %v74, %v68
    %v77 = vsel %vm75, 1, 0
    %v78 = vsel %vm76, 1, 0
    %v79 = vcvt.s32.f32 %v77
    %v80 = vcvt.s32.f32 %v78
    %v81 = vld [vmem:[#allocation3] sm:$0xff]
    %v82 = vld [vmem:[#allocation3 + $0x8] sm:$0xff]
    %vm83 = vcmask 130048
    %v85 = vsel %vm83, %v79, 0
    %v88 = vsel %vm83, %v80, 0
    %90 = vmatpush.msra.mxu0 0.0
    %91 = vmatpush.msra.mxu0 0.0
    %92 = vmatpush.msra.mxu0 0.0
    %93 = vmatpush.msra.mxu0 0.0
    %94 = vmatpush.msra.mxu0 0.0
    %95 = vmatpush.msra.mxu0 0.0
    %96 = vmatpush.msra.mxu0 0.0
    %97 = vmatpush.msra.mxu0 0.0
    %98 = vmatpush.msra.mxu0 0.0
    %99 = vmatpush.msra.mxu0 0.0
    %100 = vmatpush.msra.mxu0 0.0
    %101 = vmatpush.msra.mxu0 0.0
    %102 = vmatpush.msra.mxu0 0.0
    %103 = vmatpush.msra.mxu0 0.0
    %104 = vmatpush.msra.mxu0 %v82
    %105 = vmatpush.msra.mxu0 %v81
    %106 = vmatmul.f32.gmra.mxu0 %v85
    %v107 = vpop.f32.mrf.mxu0
    %v108 = vadd.f32 0.0, %v107
    %109 = vmatmul.f32.gmra.mxu0 %v88
    %v110 = vpop.f32.mrf.mxu0
    %v111 = vadd.f32 0.0, %v110
    %112 = vdwg.mxu0
    %v113 = vld [vmem:[%s2] sm:$0xff]
    %v114 = vld [vmem:[%s2 + $0x8] sm:$0xff]
    %v115 = vld [vmem:[%s2 + $0x10] sm:$0xff]
    %v116 = vld [vmem:[%s2 + $0x18] sm:$0xff]
    %v117 = vld [vmem:[%s4] sm:$0x1]
    %v119 = vperm.slane %v117, 0
    %vm121 = vcmask 261120
    %v123 = vsel %vm121, %v108, 0
    %v126 = vsel %vm121, %v111, 0
    %128 = vmatpush.msra.mxu0 0.0
    %129 = vmatpush.msra.mxu0 0.0
    %130 = vmatpush.msra.mxu0 0.0
    %131 = vmatpush.msra.mxu0 0.0
    %132 = vmatpush.msra.mxu0 0.0
    %133 = vmatpush.msra.mxu0 0.0
    %134 = vmatpush.msra.mxu0 0.0
    %135 = vmatpush.msra.mxu0 0.0
    %136 = vmatpush.msra.mxu0 0.0
    %137 = vmatpush.msra.mxu0 0.0
    %138 = vmatpush.msra.mxu0 0.0
    %139 = vmatpush.msra.mxu0 0.0
    %140 = vmatpush.msra.mxu0 %v116
    %141 = vmatpush.msra.mxu0 %v115
    %142 = vmatpush.msra.mxu0 %v114
    %143 = vmatpush.msra.mxu0 %v113
    %144 = vmatmul.f32.gmra.mxu0 %v123
    %v145 = vpop.f32.mrf.mxu0
    %v146 = vadd.f32 %v119, %v145
    %147 = vmatmul.f32.gmra.mxu0 %v126
    %v148 = vpop.f32.mrf.mxu0
    %v149 = vadd.f32 %v119, %v148
    %150 = vdwg.mxu0
    %151 = vst [vmem:[#allocation2] sm:$0xff] %v146
    %152 = vst [vmem:[#allocation2 + $0x8] sm:$0xff] %v149
    %v153 = vld [vmem:[#allocation6] sm:$0xff]
    %v154 = vld [vmem:[#allocation6 + $0x8] sm:$0xff]
    %v155 = vld [vmem:[#allocation6 + $0x10] sm:$0xff]
    %v156 = vld [vmem:[#allocation6 + $0x18] sm:$0xff]
    %v157 = vld [vmem:[%s5] sm:$0x1]
    %v158 = vld [vmem:[%s6] sm:$0x1]
    %v159 = vld [vmem:[%s7] sm:$0x1]
    %v160 = vld [vmem:[%s8] sm:$0x1]
    %v161 = vld [vmem:[#allocation2] sm:$0x3]
    %v163 = vsel %vm121, 0.0, 0
    %165 = vmatpush.msra.mxu0 0.0
    %166 = vmatpush.msra.mxu0 0.0
    %167 = vmatpush.msra.mxu0 0.0
    %168 = vmatpush.msra.mxu0 0.0
    %169 = vmatpush.msra.mxu0 0.0
    %170 = vmatpush.msra.mxu0 0.0
    %171 = vmatpush.msra.mxu0 0.0
    %172 = vmatpush.msra.mxu0 0.0
    %173 = vmatpush.msra.mxu0 0.0
    %174 = vmatpush.msra.mxu0 0.0
    %175 = vmatpush.msra.mxu0 0.0
    %176 = vmatpush.msra.mxu0 0.0
    %177 = vmatpush.msra.mxu0 %v156
    %178 = vmatpush.msra.mxu0 %v155
    %179 = vmatpush.msra.mxu0 %v154
    %180 = vmatpush.msra.mxu0 %v153
    %181 = vmatmul.f32.gmra.mxu0 %v163
    %v182 = vpop.f32.mrf.mxu0
    %v183 = vadd.f32 0.0, %v182
    %184 = vdwg.mxu0
    %v185 = vadd.f32 %v161, %v183
    %v186 = vxor.u32 %v185, 2147483648
    %v187 = vmul.f32 %v186, 1.442695
    %v188 = vpow.pop %v187
    %v189 = vadd.f32 %v188, 1.0
    %v190 = vrcp.pop %v189
    %v191 = vmul.f32 %v189, %v190
    %v192 = vsub.f32 1.0, %v191
    %v193 = vmul.f32 %v190, %v192
    %v194 = vadd.f32 %v190, %v193
    %vm195 = vweird.f32 %v189
    %vm196 = vweird.f32 %v190
    %vm197 = vmor %vm195, %vm196
    %v198 = vsel %vm197, %v190, %v194
    %v199 = vand.u32 2147483647, %v189
    %vm200 = vcmp.eq.f32.partialorder %v199, 8.507059e+37
    %v201 = vand.u32 %v189, 2147483648
    %v202 = vor.u32 1.1754944e-38, %v201
    %v203 = vsel %vm200, %v202, %v198
    %v204 = vmul.f32 1.0, %v203
    %v205 = vtanh.pop %v185
    %v206 = vmul.f32 %v204, 0.0
    %208 = vrot.lane.b32.xlu0 %v205, 64
    %v209 = vpop.permute.xlu0 %208
    %v211 = vmul.f32 %v204, %v209
    %213 = vrot.lane.b32.xlu0 %v211, 32
    %v214 = vpop.permute.xlu0 %213
    %v216 = vadd.f32 %v206, %v214
    %v217 = vtanh.pop %v216
    %219 = vrot.lane.b32.xlu0 %v217, 64
    %v220 = vpop.permute.xlu0 %219
    %v222 = vmul.f32 %v204, %v220
    %224 = vrot.lane.b32.xlu0 %v222, 32
    %v225 = vpop.permute.xlu0 %224
    %vm227 = vcmask 254976
    %v228 = vsel %vm227, %v225, 0.0
    %229 = vadd.xlane.f32.xlu0 %v228
    %v230 = vpop.xlane.xlu0 %229
    %v231 = vrcp.pop 32.0
    %v232 = vmul.f32 32.0, %v231
    %v233 = vsub.f32 1.0, %v232
    %v234 = vmul.f32 %v231, %v233
    %v235 = vadd.f32 %v231, %v234
    %vm236 = vweird.f32 %v231
    %v237 = vsel %vm236, %v231, %v235
    %v238 = vmul.f32 %v230, %v237
    %v239 = vsub.f32 %v222, %v238
    %v240 = vmul.f32 %v239, %v239
    %242 = vrot.lane.b32.xlu0 %v240, 32
    %v243 = vpop.permute.xlu0 %242
    %v245 = vsel %vm227, %v243, 0.0
    %246 = vadd.xlane.f32.xlu0 %v245
    %v247 = vpop.xlane.xlu0 %246
    %v248 = vmul.f32 %v247, %v237
    %v249 = vadd.f32 %v248, 1e-05
    %v250 = vrsqrt.pop %v249
    %v251 = vmul.f32 %v250, %v249
    %v252 = vmul.f32 %v251, %v250
    %v253 = vmul.f32 0.5, %v252
    %v254 = vsub.f32 1.5, %v253
    %v255 = vmul.f32 %v250, %v254
    %vm256 = vweird.f32 %v249
    %vm257 = vweird.f32 %v250
    %vm258 = vmor %vm256, %vm257
    %v259 = vsel %vm258, %v250, %v255
    %v260 = vmul.f32 %v239, %v259
    %v262 = vperm.slane %v157, 0
    %263 = vrot.lane.b32.xlu0 %v262, 96
    %v264 = vpop.permute.xlu0 %263
    %v266 = vmul.f32 %v260, %v264
    %v268 = vperm.slane %v158, 0
    %269 = vrot.lane.b32.xlu0 %v268, 96
    %v270 = vpop.permute.xlu0 %269
    %v272 = vadd.f32 %v266, %v270
    %274 = vrot.lane.b32.xlu0 %v216, 96
    %v275 = vpop.permute.xlu0 %274
    %v277 = vsel %vm227, %v275, 0.0
    %278 = vadd.xlane.f32.xlu0 %v277
    %v279 = vpop.xlane.xlu0 %278
    %v280 = vmul.f32 %v279, %v237
    %v281 = vsub.f32 %v216, %v280
    %v282 = vmul.f32 %v281, %v281
    %284 = vrot.lane.b32.xlu0 %v282, 96
    %v285 = vpop.permute.xlu0 %284
    %v287 = vsel %vm227, %v285, 0.0
    %288 = vadd.xlane.f32.xlu0 %v287
    %v289 = vpop.xlane.xlu0 %288
    %v290 = vmul.f32 %v289, %v237
    %v291 = vadd.f32 %v290, 1e-05
    %v292 = vrsqrt.pop %v291
    %v293 = vmul.f32 %v292, %v291
    %v294 = vmul.f32 %v293, %v292
    %v295 = vmul.f32 0.5, %v294
    %v296 = vsub.f32 1.5, %v295
    %v297 = vmul.f32 %v292, %v296
    %vm298 = vweird.f32 %v291
    %vm299 = vweird.f32 %v292
    %vm300 = vmor %vm298, %vm299
    %v301 = vsel %vm300, %v292, %v297
    %v302 = vmul.f32 %v281, %v301
    %v304 = vperm.slane %v159, 0
    %305 = vrot.lane.b32.xlu0 %v304, 32
    %v306 = vpop.permute.xlu0 %305
    %v308 = vmul.f32 %v302, %v306
    %v310 = vperm.slane %v160, 0
    %311 = vrot.lane.b32.xlu0 %v310, 32
    %v312 = vpop.permute.xlu0 %311
    %v314 = vadd.f32 %v308, %v312
    %s315 = scalar_lea.vmem [#allocation2], 2
    %v316 = vld [vmem:[%s315] sm:$0x3]
    %318 = vrot.lane.b32.xlu0 %v272, 32
    %v319 = vpop.permute.xlu0 %318
    %v320 = vsel %vm121, %v319, 0
    %322 = vmatpush.msra.mxu0 0.0
    %323 = vmatpush.msra.mxu0 0.0
    %324 = vmatpush.msra.mxu0 0.0
    %325 = vmatpush.msra.mxu0 0.0
    %326 = vmatpush.msra.mxu0 0.0
    %327 = vmatpush.msra.mxu0 0.0
    %328 = vmatpush.msra.mxu0 0.0
    %329 = vmatpush.msra.mxu0 0.0
    %330 = vmatpush.msra.mxu0 0.0
    %331 = vmatpush.msra.mxu0 0.0
    %332 = vmatpush.msra.mxu0 0.0
    %333 = vmatpush.msra.mxu0 0.0
    %334 = vmatpush.msra.mxu0 %v156
    %335 = vmatpush.msra.mxu0 %v155
    %336 = vmatpush.msra.mxu0 %v154
    %337 = vmatpush.msra.mxu0 %v153
    %338 = vmatmul.f32.gmra.mxu0 %v320
    %v339 = vpop.f32.mrf.mxu0
    %v340 = vadd.f32 0.0, %v339
    %341 = vdwg.mxu0
    %v342 = vadd.f32 %v316, %v340
    %v343 = vxor.u32 %v342, 2147483648
    %v344 = vmul.f32 %v343, 1.442695
    %v345 = vpow.pop %v344
    %v346 = vadd.f32 %v345, 1.0
    %v347 = vrcp.pop %v346
    %v348 = vmul.f32 %v346, %v347
    %v349 = vsub.f32 1.0, %v348
    %v350 = vmul.f32 %v347, %v349
    %v351 = vadd.f32 %v347, %v350
    %vm352 = vweird.f32 %v346
    %vm353 = vweird.f32 %v347
    %vm354 = vmor %vm352, %vm353
    %v355 = vsel %vm354, %v347, %v351
    %v356 = vand.u32 2147483647, %v346
    %vm357 = vcmp.eq.f32.partialorder %v356, 8.507059e+37
    %v358 = vand.u32 %v346, 2147483648
    %v359 = vor.u32 1.1754944e-38, %v358
    %v360 = vsel %vm357, %v359, %v355
    %v361 = vmul.f32 1.0, %v360
    %v362 = vtanh.pop %v342
    %v363 = vmul.f32 %v361, %v314
    %365 = vrot.lane.b32.xlu0 %v362, 64
    %v366 = vpop.permute.xlu0 %365
    %v368 = vmul.f32 %v361, %v366
    %370 = vrot.lane.b32.xlu0 %v368, 32
    %v371 = vpop.permute.xlu0 %370
    %v373 = vadd.f32 %v363, %v371
    %v374 = vtanh.pop %v373
    %376 = vrot.lane.b32.xlu0 %v374, 64
    %v377 = vpop.permute.xlu0 %376
    %v379 = vmul.f32 %v361, %v377
    %381 = vrot.lane.b32.xlu0 %v379, 32
    %v382 = vpop.permute.xlu0 %381
    %v384 = vsel %vm227, %v382, 0.0
    %385 = vadd.xlane.f32.xlu0 %v384
    %v386 = vpop.xlane.xlu0 %385
    %v387 = vmul.f32 %v386, %v237
    %v388 = vsub.f32 %v379, %v387
    %v389 = vmul.f32 %v388, %v388
    %391 = vrot.lane.b32.xlu0 %v389, 32
    %v392 = vpop.permute.xlu0 %391
    %v394 = vsel %vm227, %v392, 0.0
    %395 = vadd.xlane.f32.xlu0 %v394
    %v396 = vpop.xlane.xlu0 %395
    %v397 = vmul.f32 %v396, %v237
    %v398 = vadd.f32 %v397, 1e-05
    %v399 = vrsqrt.pop %v398
    %v400 = vmul.f32 %v399, %v398
    %v401 = vmul.f32 %v400, %v399
    %v402 = vmul.f32 0.5, %v401
    %v403 = vsub.f32 1.5, %v402
    %v404 = vmul.f32 %v399, %v403
    %vm405 = vweird.f32 %v398
    %vm406 = vweird.f32 %v399
    %vm407 = vmor %vm405, %vm406
    %v408 = vsel %vm407, %v399, %v404
    %v409 = vmul.f32 %v388, %v408
    %v410 = vmul.f32 %v409, %v264
    %v411 = vadd.f32 %v410, %v270
    %413 = vrot.lane.b32.xlu0 %v373, 96
    %v414 = vpop.permute.xlu0 %413
    %v416 = vsel %vm227, %v414, 0.0
    %417 = vadd.xlane.f32.xlu0 %v416
    %v418 = vpop.xlane.xlu0 %417
    %v419 = vmul.f32 %v418, %v237
    %v420 = vsub.f32 %v373, %v419
    %v421 = vmul.f32 %v420, %v420
    %423 = vrot.lane.b32.xlu0 %v421, 96
    %v424 = vpop.permute.xlu0 %423
    %v426 = vsel %vm227, %v424, 0.0
    %427 = vadd.xlane.f32.xlu0 %v426
    %v428 = vpop.xlane.xlu0 %427
    %v429 = vmul.f32 %v428, %v237
    %v430 = vadd.f32 %v429, 1e-05
    %v431 = vrsqrt.pop %v430
    %v432 = vmul.f32 %v431, %v430
    %v433 = vmul.f32 %v432, %v431
    %v434 = vmul.f32 0.5, %v433
    %v435 = vsub.f32 1.5, %v434
    %v436 = vmul.f32 %v431, %v435
    %vm437 = vweird.f32 %v430
    %vm438 = vweird.f32 %v431
    %vm439 = vmor %vm437, %vm438
    %v440 = vsel %vm439, %v431, %v436
    %v441 = vmul.f32 %v420, %v440
    %v442 = vmul.f32 %v441, %v306
    %v443 = vadd.f32 %v442, %v312
    %s444 = scalar_lea.vmem [#allocation2], 4
    %v445 = vld [vmem:[%s444] sm:$0x3]
    %447 = vrot.lane.b32.xlu0 %v411, 32
    %v448 = vpop.permute.xlu0 %447
    %v449 = vsel %vm121, %v448, 0
    %451 = vmatpush.msra.mxu0 0.0
    %452 = vmatpush.msra.mxu0 0.0
    %453 = vmatpush.msra.mxu0 0.0
    %454 = vmatpush.msra.mxu0 0.0
    %455 = vmatpush.msra.mxu0 0.0
    %456 = vmatpush.msra.mxu0 0.0
    %457 = vmatpush.msra.mxu0 0.0
    %458 = vmatpush.msra.mxu0 0.0
    %459 = vmatpush.msra.mxu0 0.0
    %460 = vmatpush.msra.mxu0 0.0
    %461 = vmatpush.msra.mxu0 0.0
    %462 = vmatpush.msra.mxu0 0.0
    %463 = vmatpush.msra.mxu0 %v156
    %464 = vmatpush.msra.mxu0 %v155
    %465 = vmatpush.msra.mxu0 %v154
    %466 = vmatpush.msra.mxu0 %v153
    %467 = vmatmul.f32.gmra.mxu0 %v449
    %v468 = vpop.f32.mrf.mxu0
    %v469 = vadd.f32 0.0, %v468
    %470 = vdwg.mxu0
    %v471 = vadd.f32 %v445, %v469
    %v472 = vxor.u32 %v471, 2147483648
    %v473 = vmul.f32 %v472, 1.442695
    %v474 = vpow.pop %v473
    %v475 = vadd.f32 %v474, 1.0
    %v476 = vrcp.pop %v475
    %v477 = vmul.f32 %v475, %v476
    %v478 = vsub.f32 1.0, %v477
    %v479 = vmul.f32 %v476, %v478
    %v480 = vadd.f32 %v476, %v479
    %vm481 = vweird.f32 %v475
    %vm482 = vweird.f32 %v476
    %vm483 = vmor %vm481, %vm482
    %v484 = vsel %vm483, %v476, %v480
    %v485 = vand.u32 2147483647, %v475
    %vm486 = vcmp.eq.f32.partialorder %v485, 8.507059e+37
    %v487 = vand.u32 %v475, 2147483648
    %v488 = vor.u32 1.1754944e-38, %v487
    %v489 = vsel %vm486, %v488, %v484
    %v490 = vmul.f32 1.0, %v489
    %v491 = vtanh.pop %v471
    %v492 = vmul.f32 %v490, %v443
    %494 = vrot.lane.b32.xlu0 %v491, 64
    %v495 = vpop.permute.xlu0 %494
    %v497 = vmul.f32 %v490, %v495
    %499 = vrot.lane.b32.xlu0 %v497, 32
    %v500 = vpop.permute.xlu0 %499
    %v502 = vadd.f32 %v492, %v500
    %v503 = vtanh.pop %v502
    %505 = vrot.lane.b32.xlu0 %v503, 64
    %v506 = vpop.permute.xlu0 %505
    %v508 = vmul.f32 %v490, %v506
    %510 = vrot.lane.b32.xlu0 %v508, 32
    %v511 = vpop.permute.xlu0 %510
    %v513 = vsel %vm227, %v511, 0.0
    %514 = vadd.xlane.f32.xlu0 %v513
    %v515 = vpop.xlane.xlu0 %514
    %v516 = vmul.f32 %v515, %v237
    %v517 = vsub.f32 %v508, %v516
    %v518 = vmul.f32 %v517, %v517
    %520 = vrot.lane.b32.xlu0 %v518, 32
    %v521 = vpop.permute.xlu0 %520
    %v523 = vsel %vm227, %v521, 0.0
    %524 = vadd.xlane.f32.xlu0 %v523
    %v525 = vpop.xlane.xlu0 %524
    %v526 = vmul.f32 %v525, %v237
    %v527 = vadd.f32 %v526, 1e-05
    %v528 = vrsqrt.pop %v527
    %v529 = vmul.f32 %v528, %v527
    %v530 = vmul.f32 %v529, %v528
    %v531 = vmul.f32 0.5, %v530
    %v532 = vsub.f32 1.5, %v531
    %v533 = vmul.f32 %v528, %v532
    %vm534 = vweird.f32 %v527
    %vm535 = vweird.f32 %v528
    %vm536 = vmor %vm534, %vm535
    %v537 = vsel %vm536, %v528, %v533
    %v538 = vmul.f32 %v517, %v537
    %v539 = vmul.f32 %v538, %v264
    %v540 = vadd.f32 %v539, %v270
    %542 = vrot.lane.b32.xlu0 %v502, 96
    %v543 = vpop.permute.xlu0 %542
    %v545 = vsel %vm227, %v543, 0.0
    %546 = vadd.xlane.f32.xlu0 %v545
    %v547 = vpop.xlane.xlu0 %546
    %v548 = vmul.f32 %v547, %v237
    %v549 = vsub.f32 %v502, %v548
    %v550 = vmul.f32 %v549, %v549
    %552 = vrot.lane.b32.xlu0 %v550, 96
    %v553 = vpop.permute.xlu0 %552
    %v555 = vsel %vm227, %v553, 0.0
    %556 = vadd.xlane.f32.xlu0 %v555
    %v557 = vpop.xlane.xlu0 %556
    %v558 = vmul.f32 %v557, %v237
    %v559 = vadd.f32 %v558, 1e-05
    %v560 = vrsqrt.pop %v559
    %v561 = vmul.f32 %v560, %v559
    %v562 = vmul.f32 %v561, %v560
    %v563 = vmul.f32 0.5, %v562
    %v564 = vsub.f32 1.5, %v563
    %v565 = vmul.f32 %v560, %v564
    %vm566 = vweird.f32 %v559
    %vm567 = vweird.f32 %v560
    %vm568 = vmor %vm566, %vm567
    %v569 = vsel %vm568, %v560, %v565
    %v570 = vmul.f32 %v549, %v569
    %v571 = vmul.f32 %v570, %v306
    %v572 = vadd.f32 %v571, %v312
    %s573 = scalar_lea.vmem [#allocation2], 6
    %v574 = vld [vmem:[%s573] sm:$0x3]
    %576 = vrot.lane.b32.xlu0 %v540, 32
    %v577 = vpop.permute.xlu0 %576
    %v578 = vsel %vm121, %v577, 0
    %580 = vmatpush.msra.mxu0 0.0
    %581 = vmatpush.msra.mxu0 0.0
    %582 = vmatpush.msra.mxu0 0.0
    %583 = vmatpush.msra.mxu0 0.0
    %584 = vmatpush.msra.mxu0 0.0
    %585 = vmatpush.msra.mxu0 0.0
    %586 = vmatpush.msra.mxu0 0.0
    %587 = vmatpush.msra.mxu0 0.0
    %588 = vmatpush.msra.mxu0 0.0
    %589 = vmatpush.msra.mxu0 0.0
    %590 = vmatpush.msra.mxu0 0.0
    %591 = vmatpush.msra.mxu0 0.0
    %592 = vmatpush.msra.mxu0 %v156
    %593 = vmatpush.msra.mxu0 %v155
    %594 = vmatpush.msra.mxu0 %v154
    %595 = vmatpush.msra.mxu0 %v153
    %596 = vmatmul.f32.gmra.mxu0 %v578
    %v597 = vpop.f32.mrf.mxu0
    %v598 = vadd.f32 0.0, %v597
    %599 = vdwg.mxu0
    %v600 = vadd.f32 %v574, %v598
    %v601 = vxor.u32 %v600, 2147483648
    %v602 = vmul.f32 %v601, 1.442695
    %v603 = vpow.pop %v602
    %v604 = vadd.f32 %v603, 1.0
    %v605 = vrcp.pop %v604
    %v606 = vmul.f32 %v604, %v605
    %v607 = vsub.f32 1.0, %v606
    %v608 = vmul.f32 %v605, %v607
    %v609 = vadd.f32 %v605, %v608
    %vm610 = vweird.f32 %v604
    %vm611 = vweird.f32 %v605
    %vm612 = vmor %vm610, %vm611
    %v613 = vsel %vm612, %v605, %v609
    %v614 = vand.u32 2147483647, %v604
    %vm615 = vcmp.eq.f32.partialorder %v614, 8.507059e+37
    %v616 = vand.u32 %v604, 2147483648
    %v617 = vor.u32 1.1754944e-38, %v616
    %v618 = vsel %vm615, %v617, %v613
    %v619 = vmul.f32 1.0, %v618
    %v620 = vtanh.pop %v600
    %v621 = vmul.f32 %v619, %v572
    %623 = vrot.lane.b32.xlu0 %v620, 64
    %v624 = vpop.permute.xlu0 %623
    %v626 = vmul.f32 %v619, %v624
    %628 = vrot.lane.b32.xlu0 %v626, 32
    %v629 = vpop.permute.xlu0 %628
    %v631 = vadd.f32 %v621, %v629
    %v632 = vtanh.pop %v631
    %634 = vrot.lane.b32.xlu0 %v632, 64
    %v635 = vpop.permute.xlu0 %634
    %v637 = vmul.f32 %v619, %v635
    %639 = vrot.lane.b32.xlu0 %v637, 32
    %v640 = vpop.permute.xlu0 %639
    %v642 = vsel %vm227, %v640, 0.0
    %643 = vadd.xlane.f32.xlu0 %v642
    %v644 = vpop.xlane.xlu0 %643
    %v645 = vmul.f32 %v644, %v237
    %v646 = vsub.f32 %v637, %v645
    %v647 = vmul.f32 %v646, %v646
    %649 = vrot.lane.b32.xlu0 %v647, 32
    %v650 = vpop.permute.xlu0 %649
    %v652 = vsel %vm227, %v650, 0.0
    %653 = vadd.xlane.f32.xlu0 %v652
    %v654 = vpop.xlane.xlu0 %653
    %v655 = vmul.f32 %v654, %v237
    %v656 = vadd.f32 %v655, 1e-05
    %v657 = vrsqrt.pop %v656
    %v658 = vmul.f32 %v657, %v656
    %v659 = vmul.f32 %v658, %v657
    %v660 = vmul.f32 0.5, %v659
    %v661 = vsub.f32 1.5, %v660
    %v662 = vmul.f32 %v657, %v661
    %vm663 = vweird.f32 %v656
    %vm664 = vweird.f32 %v657
    %vm665 = vmor %vm663, %vm664
    %v666 = vsel %vm665, %v657, %v662
    %v667 = vmul.f32 %v646, %v666
    %v668 = vmul.f32 %v667, %v264
    %v669 = vadd.f32 %v668, %v270
    %671 = vrot.lane.b32.xlu0 %v631, 96
    %v672 = vpop.permute.xlu0 %671
    %v674 = vsel %vm227, %v672, 0.0
    %675 = vadd.xlane.f32.xlu0 %v674
    %v676 = vpop.xlane.xlu0 %675
    %v677 = vmul.f32 %v676, %v237
    %v678 = vsub.f32 %v631, %v677
    %v679 = vmul.f32 %v678, %v678
    %681 = vrot.lane.b32.xlu0 %v679, 96
    %v682 = vpop.permute.xlu0 %681
    %v684 = vsel %vm227, %v682, 0.0
    %685 = vadd.xlane.f32.xlu0 %v684
    %v686 = vpop.xlane.xlu0 %685
    %v687 = vmul.f32 %v686, %v237
    %v688 = vadd.f32 %v687, 1e-05
    %v689 = vrsqrt.pop %v688
    %v690 = vmul.f32 %v689, %v688
    %v691 = vmul.f32 %v690, %v689
    %v692 = vmul.f32 0.5, %v691
    %v693 = vsub.f32 1.5, %v692
    %v694 = vmul.f32 %v689, %v693
    %vm695 = vweird.f32 %v688
    %vm696 = vweird.f32 %v689
    %vm697 = vmor %vm695, %vm696
    %v698 = vsel %vm697, %v689, %v694
    %v699 = vmul.f32 %v678, %v698
    %v700 = vmul.f32 %v699, %v306
    %v701 = vadd.f32 %v700, %v312
    %s702 = scalar_lea.vmem [#allocation2], 8
    %v703 = vld [vmem:[%s702] sm:$0x3]
    %705 = vrot.lane.b32.xlu0 %v669, 32
    %v706 = vpop.permute.xlu0 %705
    %v707 = vsel %vm121, %v706, 0
    %709 = vmatpush.msra.mxu0 0.0
    %710 = vmatpush.msra.mxu0 0.0
    %711 = vmatpush.msra.mxu0 0.0
    %712 = vmatpush.msra.mxu0 0.0
    %713 = vmatpush.msra.mxu0 0.0
    %714 = vmatpush.msra.mxu0 0.0
    %715 = vmatpush.msra.mxu0 0.0
    %716 = vmatpush.msra.mxu0 0.0
    %717 = vmatpush.msra.mxu0 0.0
    %718 = vmatpush.msra.mxu0 0.0
    %719 = vmatpush.msra.mxu0 0.0
    %720 = vmatpush.msra.mxu0 0.0
    %721 = vmatpush.msra.mxu0 %v156
    %722 = vmatpush.msra.mxu0 %v155
    %723 = vmatpush.msra.mxu0 %v154
    %724 = vmatpush.msra.mxu0 %v153
    %725 = vmatmul.f32.gmra.mxu0 %v707
    %v726 = vpop.f32.mrf.mxu0
    %v727 = vadd.f32 0.0, %v726
    %728 = vdwg.mxu0
    %v729 = vadd.f32 %v703, %v727
    %v730 = vxor.u32 %v729, 2147483648
    %v731 = vmul.f32 %v730, 1.442695
    %v732 = vpow.pop %v731
    %v733 = vadd.f32 %v732, 1.0
    %v734 = vrcp.pop %v733
    %v735 = vmul.f32 %v733, %v734
    %v736 = vsub.f32 1.0, %v735
    %v737 = vmul.f32 %v734, %v736
    %v738 = vadd.f32 %v734, %v737
    %vm739 = vweird.f32 %v733
    %vm740 = vweird.f32 %v734
    %vm741 = vmor %vm739, %vm740
    %v742 = vsel %vm741, %v734, %v738
    %v743 = vand.u32 2147483647, %v733
    %vm744 = vcmp.eq.f32.partialorder %v743, 8.507059e+37
    %v745 = vand.u32 %v733, 2147483648
    %v746 = vor.u32 1.1754944e-38, %v745
    %v747 = vsel %vm744, %v746, %v742
    %v748 = vmul.f32 1.0, %v747
    %v749 = vtanh.pop %v729
    %v750 = vmul.f32 %v748, %v701
    %752 = vrot.lane.b32.xlu0 %v749, 64
    %v753 = vpop.permute.xlu0 %752
    %v755 = vmul.f32 %v748, %v753
    %757 = vrot.lane.b32.xlu0 %v755, 32
    %v758 = vpop.permute.xlu0 %757
    %v760 = vadd.f32 %v750, %v758
    %v761 = vtanh.pop %v760
    %763 = vrot.lane.b32.xlu0 %v761, 64
    %v764 = vpop.permute.xlu0 %763
    %v766 = vmul.f32 %v748, %v764
    %768 = vrot.lane.b32.xlu0 %v766, 32
    %v769 = vpop.permute.xlu0 %768
    %v771 = vsel %vm227, %v769, 0.0
    %772 = vadd.xlane.f32.xlu0 %v771
    %v773 = vpop.xlane.xlu0 %772
    %v774 = vmul.f32 %v773, %v237
    %v775 = vsub.f32 %v766, %v774
    %v776 = vmul.f32 %v775, %v775
    %778 = vrot.lane.b32.xlu0 %v776, 32
    %v779 = vpop.permute.xlu0 %778
    %v781 = vsel %vm227, %v779, 0.0
    %782 = vadd.xlane.f32.xlu0 %v781
    %v783 = vpop.xlane.xlu0 %782
    %v784 = vmul.f32 %v783, %v237
    %v785 = vadd.f32 %v784, 1e-05
    %v786 = vrsqrt.pop %v785
    %v787 = vmul.f32 %v786, %v785
    %v788 = vmul.f32 %v787, %v786
    %v789 = vmul.f32 0.5, %v788
    %v790 = vsub.f32 1.5, %v789
    %v791 = vmul.f32 %v786, %v790
    %vm792 = vweird.f32 %v785
    %vm793 = vweird.f32 %v786
    %vm794 = vmor %vm792, %vm793
    %v795 = vsel %vm794, %v786, %v791
    %v796 = vmul.f32 %v775, %v795
    %v797 = vmul.f32 %v796, %v264
    %v798 = vadd.f32 %v797, %v270
    %800 = vrot.lane.b32.xlu0 %v760, 96
    %v801 = vpop.permute.xlu0 %800
    %v803 = vsel %vm227, %v801, 0.0
    %804 = vadd.xlane.f32.xlu0 %v803
    %v805 = vpop.xlane.xlu0 %804
    %v806 = vmul.f32 %v805, %v237
    %v807 = vsub.f32 %v760, %v806
    %v808 = vmul.f32 %v807, %v807
    %810 = vrot.lane.b32.xlu0 %v808, 96
    %v811 = vpop.permute.xlu0 %810
    %v813 = vsel %vm227, %v811, 0.0
    %814 = vadd.xlane.f32.xlu0 %v813
    %v815 = vpop.xlane.xlu0 %814
    %v816 = vmul.f32 %v815, %v237
    %v817 = vadd.f32 %v816, 1e-05
    %v818 = vrsqrt.pop %v817
    %v819 = vmul.f32 %v818, %v817
    %v820 = vmul.f32 %v819, %v818
    %v821 = vmul.f32 0.5, %v820
    %v822 = vsub.f32 1.5, %v821
    %v823 = vmul.f32 %v818, %v822
    %vm824 = vweird.f32 %v817
    %vm825 = vweird.f32 %v818
    %vm826 = vmor %vm824, %vm825
    %v827 = vsel %vm826, %v818, %v823
    %v828 = vmul.f32 %v807, %v827
    %v829 = vmul.f32 %v828, %v306
    %v830 = vadd.f32 %v829, %v312
    %s831 = scalar_lea.vmem [#allocation2], 10
    %v832 = vld [vmem:[%s831] sm:$0x3]
    %834 = vrot.lane.b32.xlu0 %v798, 32
    %v835 = vpop.permute.xlu0 %834
    %v836 = vsel %vm121, %v835, 0
    %838 = vmatpush.msra.mxu0 0.0
    %839 = vmatpush.msra.mxu0 0.0
    %840 = vmatpush.msra.mxu0 0.0
    %841 = vmatpush.msra.mxu0 0.0
    %842 = vmatpush.msra.mxu0 0.0
    %843 = vmatpush.msra.mxu0 0.0
    %844 = vmatpush.msra.mxu0 0.0
    %845 = vmatpush.msra.mxu0 0.0
    %846 = vmatpush.msra.mxu0 0.0
    %847 = vmatpush.msra.mxu0 0.0
    %848 = vmatpush.msra.mxu0 0.0
    %849 = vmatpush.msra.mxu0 0.0
    %850 = vmatpush.msra.mxu0 %v156
    %851 = vmatpush.msra.mxu0 %v155
    %852 = vmatpush.msra.mxu0 %v154
    %853 = vmatpush.msra.mxu0 %v153
    %854 = vmatmul.f32.gmra.mxu0 %v836
    %v855 = vpop.f32.mrf.mxu0
    %v856 = vadd.f32 0.0, %v855
    %857 = vdwg.mxu0
    %v858 = vadd.f32 %v832, %v856
    %v859 = vxor.u32 %v858, 2147483648
    %v860 = vmul.f32 %v859, 1.442695
    %v861 = vpow.pop %v860
    %v862 = vadd.f32 %v861, 1.0
    %v863 = vrcp.pop %v862
    %v864 = vmul.f32 %v862, %v863
    %v865 = vsub.f32 1.0, %v864
    %v866 = vmul.f32 %v863, %v865
    %v867 = vadd.f32 %v863, %v866
    %vm868 = vweird.f32 %v862
    %vm869 = vweird.f32 %v863
    %vm870 = vmor %vm868, %vm869
    %v871 = vsel %vm870, %v863, %v867
    %v872 = vand.u32 2147483647, %v862
    %vm873 = vcmp.eq.f32.partialorder %v872, 8.507059e+37
    %v874 = vand.u32 %v862, 2147483648
    %v875 = vor.u32 1.1754944e-38, %v874
    %v876 = vsel %vm873, %v875, %v871
    %v877 = vmul.f32 1.0, %v876
    %v878 = vtanh.pop %v858
    %v879 = vmul.f32 %v877, %v830
    %881 = vrot.lane.b32.xlu0 %v878, 64
    %v882 = vpop.permute.xlu0 %881
    %v884 = vmul.f32 %v877, %v882
    %886 = vrot.lane.b32.xlu0 %v884, 32
    %v887 = vpop.permute.xlu0 %886
    %v889 = vadd.f32 %v879, %v887
    %v890 = vtanh.pop %v889
    %892 = vrot.lane.b32.xlu0 %v890, 64
    %v893 = vpop.permute.xlu0 %892
    %v895 = vmul.f32 %v877, %v893
    %897 = vrot.lane.b32.xlu0 %v895, 32
    %v898 = vpop.permute.xlu0 %897
    %v900 = vsel %vm227, %v898, 0.0
    %901 = vadd.xlane.f32.xlu0 %v900
    %v902 = vpop.xlane.xlu0 %901
    %v903 = vmul.f32 %v902, %v237
    %v904 = vsub.f32 %v895, %v903
    %v905 = vmul.f32 %v904, %v904
    %907 = vrot.lane.b32.xlu0 %v905, 32
    %v908 = vpop.permute.xlu0 %907
    %v910 = vsel %vm227, %v908, 0.0
    %911 = vadd.xlane.f32.xlu0 %v910
    %v912 = vpop.xlane.xlu0 %911
    %v913 = vmul.f32 %v912, %v237
    %v914 = vadd.f32 %v913, 1e-05
    %v915 = vrsqrt.pop %v914
    %v916 = vmul.f32 %v915, %v914
    %v917 = vmul.f32 %v916, %v915
    %v918 = vmul.f32 0.5, %v917
    %v919 = vsub.f32 1.5, %v918
    %v920 = vmul.f32 %v915, %v919
    %vm921 = vweird.f32 %v914
    %vm922 = vweird.f32 %v915
    %vm923 = vmor %vm921, %vm922
    %v924 = vsel %vm923, %v915, %v920
    %v925 = vmul.f32 %v904, %v924
    %v926 = vmul.f32 %v925, %v264
    %v927 = vadd.f32 %v926, %v270
    %929 = vrot.lane.b32.xlu0 %v889, 96
    %v930 = vpop.permute.xlu0 %929
    %v932 = vsel %vm227, %v930, 0.0
    %933 = vadd.xlane.f32.xlu0 %v932
    %v934 = vpop.xlane.xlu0 %933
    %v935 = vmul.f32 %v934, %v237
    %v936 = vsub.f32 %v889, %v935
    %v937 = vmul.f32 %v936, %v936
    %939 = vrot.lane.b32.xlu0 %v937, 96
    %v940 = vpop.permute.xlu0 %939
    %v942 = vsel %vm227, %v940, 0.0
    %943 = vadd.xlane.f32.xlu0 %v942
    %v944 = vpop.xlane.xlu0 %943
    %v945 = vmul.f32 %v944, %v237
    %v946 = vadd.f32 %v945, 1e-05
    %v947 = vrsqrt.pop %v946
    %v948 = vmul.f32 %v947, %v946
    %v949 = vmul.f32 %v948, %v947
    %v950 = vmul.f32 0.5, %v949
    %v951 = vsub.f32 1.5, %v950
    %v952 = vmul.f32 %v947, %v951
    %vm953 = vweird.f32 %v946
    %vm954 = vweird.f32 %v947
    %vm955 = vmor %vm953, %vm954
    %v956 = vsel %vm955, %v947, %v952
    %v957 = vmul.f32 %v936, %v956
    %v958 = vmul.f32 %v957, %v306
    %v959 = vadd.f32 %v958, %v312
    %s960 = scalar_lea.vmem [#allocation2], 12
    %v961 = vld [vmem:[%s960] sm:$0x3]
    %963 = vrot.lane.b32.xlu0 %v927, 32
    %v964 = vpop.permute.xlu0 %963
    %v965 = vsel %vm121, %v964, 0
    %967 = vmatpush.msra.mxu0 0.0
    %968 = vmatpush.msra.mxu0 0.0
    %969 = vmatpush.msra.mxu0 0.0
    %970 = vmatpush.msra.mxu0 0.0
    %971 = vmatpush.msra.mxu0 0.0
    %972 = vmatpush.msra.mxu0 0.0
    %973 = vmatpush.msra.mxu0 0.0
    %974 = vmatpush.msra.mxu0 0.0
    %975 = vmatpush.msra.mxu0 0.0
    %976 = vmatpush.msra.mxu0 0.0
    %977 = vmatpush.msra.mxu0 0.0
    %978 = vmatpush.msra.mxu0 0.0
    %979 = vmatpush.msra.mxu0 %v156
    %980 = vmatpush.msra.mxu0 %v155
    %981 = vmatpush.msra.mxu0 %v154
    %982 = vmatpush.msra.mxu0 %v153
    %983 = vmatmul.f32.gmra.mxu0 %v965
    %v984 = vpop.f32.mrf.mxu0
    %v985 = vadd.f32 0.0, %v984
    %986 = vdwg.mxu0
    %v987 = vadd.f32 %v961, %v985
    %v988 = vxor.u32 %v987, 2147483648
    %v989 = vmul.f32 %v988, 1.442695
    %v990 = vpow.pop %v989
    %v991 = vadd.f32 %v990, 1.0
    %v992 = vrcp.pop %v991
    %v993 = vmul.f32 %v991, %v992
    %v994 = vsub.f32 1.0, %v993
    %v995 = vmul.f32 %v992, %v994
    %v996 = vadd.f32 %v992, %v995
    %vm997 = vweird.f32 %v991
    %vm998 = vweird.f32 %v992
    %vm999 = vmor %vm997, %vm998
    %v1000 = vsel %vm999, %v992, %v996
    %v1001 = vand.u32 2147483647, %v991
    %vm1002 = vcmp.eq.f32.partialorder %v1001, 8.507059e+37
    %v1003 = vand.u32 %v991, 2147483648
    %v1004 = vor.u32 1.1754944e-38, %v1003
    %v1005 = vsel %vm1002, %v1004, %v1000
    %v1006 = vmul.f32 1.0, %v1005
    %v1007 = vtanh.pop %v987
    %v1008 = vmul.f32 %v1006, %v959
    %1010 = vrot.lane.b32.xlu0 %v1007, 64
    %v1011 = vpop.permute.xlu0 %1010
    %v1013 = vmul.f32 %v1006, %v1011
    %1015 = vrot.lane.b32.xlu0 %v1013, 32
    %v1016 = vpop.permute.xlu0 %1015
    %v1018 = vadd.f32 %v1008, %v1016
    %v1019 = vtanh.pop %v1018
    %1021 = vrot.lane.b32.xlu0 %v1019, 64
    %v1022 = vpop.permute.xlu0 %1021
    %v1024 = vmul.f32 %v1006, %v1022
    %1026 = vrot.lane.b32.xlu0 %v1024, 32
    %v1027 = vpop.permute.xlu0 %1026
    %v1029 = vsel %vm227, %v1027, 0.0
    %1030 = vadd.xlane.f32.xlu0 %v1029
    %v1031 = vpop.xlane.xlu0 %1030
    %v1032 = vmul.f32 %v1031, %v237
    %v1033 = vsub.f32 %v1024, %v1032
    %v1034 = vmul.f32 %v1033, %v1033
    %1036 = vrot.lane.b32.xlu0 %v1034, 32
    %v1037 = vpop.permute.xlu0 %1036
    %v1039 = vsel %vm227, %v1037, 0.0
    %1040 = vadd.xlane.f32.xlu0 %v1039
    %v1041 = vpop.xlane.xlu0 %1040
    %v1042 = vmul.f32 %v1041, %v237
    %v1043 = vadd.f32 %v1042, 1e-05
    %v1044 = vrsqrt.pop %v1043
    %v1045 = vmul.f32 %v1044, %v1043
    %v1046 = vmul.f32 %v1045, %v1044
    %v1047 = vmul.f32 0.5, %v1046
    %v1048 = vsub.f32 1.5, %v1047
    %v1049 = vmul.f32 %v1044, %v1048
    %vm1050 = vweird.f32 %v1043
    %vm1051 = vweird.f32 %v1044
    %vm1052 = vmor %vm1050, %vm1051
    %v1053 = vsel %vm1052, %v1044, %v1049
    %v1054 = vmul.f32 %v1033, %v1053
    %v1055 = vmul.f32 %v1054, %v264
    %v1056 = vadd.f32 %v1055, %v270
    %1058 = vrot.lane.b32.xlu0 %v1018, 96
    %v1059 = vpop.permute.xlu0 %1058
    %v1061 = vsel %vm227, %v1059, 0.0
    %1062 = vadd.xlane.f32.xlu0 %v1061
    %v1063 = vpop.xlane.xlu0 %1062
    %v1064 = vmul.f32 %v1063, %v237
    %v1065 = vsub.f32 %v1018, %v1064
    %v1066 = vmul.f32 %v1065, %v1065
    %1068 = vrot.lane.b32.xlu0 %v1066, 96
    %v1069 = vpop.permute.xlu0 %1068
    %v1071 = vsel %vm227, %v1069, 0.0
    %1072 = vadd.xlane.f32.xlu0 %v1071
    %v1073 = vpop.xlane.xlu0 %1072
    %v1074 = vmul.f32 %v1073, %v237
    %v1075 = vadd.f32 %v1074, 1e-05
    %v1076 = vrsqrt.pop %v1075
    %v1077 = vmul.f32 %v1076, %v1075
    %v1078 = vmul.f32 %v1077, %v1076
    %v1079 = vmul.f32 0.5, %v1078
    %v1080 = vsub.f32 1.5, %v1079
    %v1081 = vmul.f32 %v1076, %v1080
    %vm1082 = vweird.f32 %v1075
    %vm1083 = vweird.f32 %v1076
    %vm1084 = vmor %vm1082, %vm1083
    %v1085 = vsel %vm1084, %v1076, %v1081
    %v1086 = vmul.f32 %v1065, %v1085
    %v1087 = vmul.f32 %v1086, %v306
    %v1088 = vadd.f32 %v1087, %v312
    %s1089 = scalar_lea.vmem [#allocation2], 14
    %v1090 = vld [vmem:[%s1089] sm:$0x3]
    %1092 = vrot.lane.b32.xlu0 %v1056, 32
    %v1093 = vpop.permute.xlu0 %1092
    %v1094 = vsel %vm121, %v1093, 0
    %1096 = vmatpush.msra.mxu0 0.0
    %1097 = vmatpush.msra.mxu0 0.0
    %1098 = vmatpush.msra.mxu0 0.0
    %1099 = vmatpush.msra.mxu0 0.0
    %1100 = vmatpush.msra.mxu0 0.0
    %1101 = vmatpush.msra.mxu0 0.0
    %1102 = vmatpush.msra.mxu0 0.0
    %1103 = vmatpush.msra.mxu0 0.0
    %1104 = vmatpush.msra.mxu0 0.0
    %1105 = vmatpush.msra.mxu0 0.0
    %1106 = vmatpush.msra.mxu0 0.0
    %1107 = vmatpush.msra.mxu0 0.0
    %1108 = vmatpush.msra.mxu0 %v156
    %1109 = vmatpush.msra.mxu0 %v155
    %1110 = vmatpush.msra.mxu0 %v154
    %1111 = vmatpush.msra.mxu0 %v153
    %1112 = vmatmul.f32.gmra.mxu0 %v1094
    %v1113 = vpop.f32.mrf.mxu0
    %v1114 = vadd.f32 0.0, %v1113
    %1115 = vdwg.mxu0
    %v1116 = vadd.f32 %v1090, %v1114
    %v1117 = vxor.u32 %v1116, 2147483648
    %v1118 = vmul.f32 %v1117, 1.442695
    %v1119 = vpow.pop %v1118
    %v1120 = vadd.f32 %v1119, 1.0
    %v1121 = vrcp.pop %v1120
    %v1122 = vmul.f32 %v1120, %v1121
    %v1123 = vsub.f32 1.0, %v1122
    %v1124 = vmul.f32 %v1121, %v1123
    %v1125 = vadd.f32 %v1121, %v1124
    %vm1126 = vweird.f32 %v1120
    %vm1127 = vweird.f32 %v1121
    %vm1128 = vmor %vm1126, %vm1127
    %v1129 = vsel %vm1128, %v1121, %v1125
    %v1130 = vand.u32 2147483647, %v1120
    %vm1131 = vcmp.eq.f32.partialorder %v1130, 8.507059e+37
    %v1132 = vand.u32 %v1120, 2147483648
    %v1133 = vor.u32 1.1754944e-38, %v1132
    %v1134 = vsel %vm1131, %v1133, %v1129
    %v1135 = vmul.f32 1.0, %v1134
    %v1136 = vtanh.pop %v1116
    %v1137 = vmul.f32 %v1135, %v1088
    %1139 = vrot.lane.b32.xlu0 %v1136, 64
    %v1140 = vpop.permute.xlu0 %1139
    %v1142 = vmul.f32 %v1135, %v1140
    %1144 = vrot.lane.b32.xlu0 %v1142, 32
    %v1145 = vpop.permute.xlu0 %1144
    %v1147 = vadd.f32 %v1137, %v1145
    %v1148 = vtanh.pop %v1147
    %1150 = vrot.lane.b32.xlu0 %v1148, 64
    %v1151 = vpop.permute.xlu0 %1150
    %v1153 = vmul.f32 %v1135, %v1151
    %1155 = vrot.lane.b32.xlu0 %v1153, 32
    %v1156 = vpop.permute.xlu0 %1155
    %v1158 = vsel %vm227, %v1156, 0.0
    %1159 = vadd.xlane.f32.xlu0 %v1158
    %v1160 = vpop.xlane.xlu0 %1159
    %v1161 = vmul.f32 %v1160, %v237
    %v1162 = vsub.f32 %v1153, %v1161
    %v1163 = vmul.f32 %v1162, %v1162
    %1165 = vrot.lane.b32.xlu0 %v1163, 32
    %v1166 = vpop.permute.xlu0 %1165
    %v1168 = vsel %vm227, %v1166, 0.0
    %1169 = vadd.xlane.f32.xlu0 %v1168
    %v1170 = vpop.xlane.xlu0 %1169
    %v1171 = vmul.f32 %v1170, %v237
    %v1172 = vadd.f32 %v1171, 1e-05
    %v1173 = vrsqrt.pop %v1172
    %v1174 = vmul.f32 %v1173, %v1172
    %v1175 = vmul.f32 %v1174, %v1173
    %v1176 = vmul.f32 0.5, %v1175
    %v1177 = vsub.f32 1.5, %v1176
    %v1178 = vmul.f32 %v1173, %v1177
    %vm1179 = vweird.f32 %v1172
    %vm1180 = vweird.f32 %v1173
    %vm1181 = vmor %vm1179, %vm1180
    %v1182 = vsel %vm1181, %v1173, %v1178
    %v1183 = vmul.f32 %v1162, %v1182
    %v1184 = vmul.f32 %v1183, %v264
    %v1185 = vadd.f32 %v1184, %v270
    %1187 = vrot.lane.b32.xlu0 %v1185, 32
    %v1188 = vpop.permute.xlu0 %1187
    %1190 = vst.msk [vmem:[#allocation8] sm:$0x3] %vm227, %v1188
    // Predicated region
    $region46: #{conditional_lstm_forward.1} parent=1 // pred_check
      _
    $region47: #{conditional_lstm_forward.1} parent=1 // pred_check_branch
      %1192 = sbr.rel (0) target = $region49
    $region48: #{conditional_lstm_forward.1} parent=1 // pred_region
      %1194 = vsyncadd [#allocation5], 0
      %s1196 = sshll.u32 [#allocation8], 4
      %s1197 = int_to_ptr.vmem [resolvable:$true] %s1196
      %s1198 = sshll.u32 %s9, 4
      %s1199 = int_to_ptr.hbm [resolvable:$true] %s1198
      %1201 = dma.vmem_to_hbm [thread:$0]  %s1197, 32, %s1199, [#allocation5]
    $region49: #{conditional_lstm_forward.1} parent=1 // pred_fallthru
      _
    // Predicated region
    $region50: #{conditional_lstm_forward.1} parent=1 // pred_check
      _
    $region51: #{conditional_lstm_forward.1} parent=1 // pred_check_branch
      %1203 = sbr.rel (0) target = $region53
    $region52: #{conditional_lstm_forward.1} parent=1 // pred_region
      %1205 = dma.done [#allocation5], 32
    $region53: #{conditional_lstm_forward.1} parent=1 // pred_fallthru
      _
    %1206 = vsyncpa [#allocation4], 1
    %1207 = vsyncpa [#allocation7], 1
    %1208 = vsyncpa [#allocation5], 1

</llo_original>
